<compile_context>
chip_gen: v7x
topology: tpu7x:2x2x1
jax: 0.10.0
libtpu: 0.0.40
codegen_flags: <defaults>
</compile_context>

<pallas_src>
import functools

import jax
import jax.numpy as jnp
from jax.experimental import pallas as pl
from jax.experimental.pallas import tpu as pltpu


def _patch_expand_kernel(x_ref, w_ref, g_ref, b_ref, o_ref, *, tr, w_pix, ds, c,
                         eps, fuse, fuse_shuffle, matmul_dtype):
    # x_ref: (tr*w_pix, C)      input pixel rows for `tr` image rows
    # w_ref: (C, ds*ds*c)       expand weight (p1, p2, c) ordered columns
    # g_ref: (1, ds*c)          LayerNorm weight, tiled over p2
    # b_ref: (1, ds*c)          LayerNorm bias, tiled over p2
    # o_ref: (tr, ds, w_pix, ds*c) fused-shuffle block  |  (tr*w_pix, ds*ds*c)
    tm = tr * w_pix
    gc = ds * c
    x = x_ref[...]
    if matmul_dtype is not None:
        x = x.astype(matmul_dtype)
    gamma = g_ref[...]
    beta = b_ref[...]
    lane = jax.lax.broadcasted_iota(jnp.int32, (tm, gc), 1)

    if fuse:
        # One wide (tm, C) @ (C, ds*gc) matmul fills the MXU better when gc is
        # narrower than the MXU column width; per-p1 halves are lane slices.
        y_full = jnp.dot(x, w_ref[...], preferred_element_type=jnp.float32)

    for p1 in range(ds):                      # static unroll, ds is small
        if fuse:
            y = y_full[:, p1 * gc:(p1 + 1) * gc]
        else:
            # Here gc >= 256 and gc % 128 == 0: 128-aligned weight-ref slice.
            y = jnp.dot(x, w_ref[:, p1 * gc:(p1 + 1) * gc],
                        preferred_element_type=jnp.float32)

        # Grouped LayerNorm over each p2 chunk of width c.  Stats come from
        # static lane slices; the narrow (tm, 1) variances are rsqrt'ed before
        # the lane-index recombine so EUP work stays gc-x cheaper.
        means = [jnp.mean(y[:, p2 * c:(p2 + 1) * c], axis=-1, keepdims=True)
                 for p2 in range(ds)]
        mean = means[0]
        for p2 in range(1, ds):
            mean = jnp.where(lane >= p2 * c, means[p2], mean)
        d = y - mean
        rstds = [jax.lax.rsqrt(
                     jnp.mean(jnp.square(d[:, p2 * c:(p2 + 1) * c]),
                              axis=-1, keepdims=True) + eps)
                 for p2 in range(ds)]
        rstd = rstds[0]
        for p2 in range(1, ds):
            rstd = jnp.where(lane >= p2 * c, rstds[p2], rstd)

        out = (d * rstd * gamma + beta).astype(o_ref.dtype)
        if fuse_shuffle:
            # (tr*W, gc) -> (tr, W, gc): sublane split, layout-preserving since
            # W % 8 == 0 on this path; one store per p1 half.
            # TODO(synk): for gc < 128 this store is lane-masked (block pads to
            # 128 lanes); folding W into the lane dim would need a sublane->lane
            # relayout whose in-kernel reshape support is version-dependent, so
            # it is intentionally not attempted here.
            o_ref[:, p1, :, :] = out.reshape(tr, w_pix, gc)
        else:
            # Natural (pixel, p1*gc) layout; shuffle happens outside the kernel.
            o_ref[:, p1 * gc:(p1 + 1) * gc] = out


def _round_up(n, m):
    return (n + m - 1) // m * m


def _pick_row_tile(bh, w_pix, per_row_bytes, target_rows, budget):
    """Pick tr (image rows per grid step), a divisor of bh, such that:
       - the (tr*W, C) input block keeps an 8-aligned sublane dim (or covers all),
       - the per-step VMEM cost (tiles + f32 working set) fits the budget,
       - tr*W stays near target_rows (amortize ~0.35us/step, HBM roofline),
       - the grid step count is even and >= 2 when possible (v7x megacore)."""
    aligned = [d for d in range(1, bh + 1)
               if bh % d == 0 and ((d * w_pix) % 8 == 0 or d == bh)]
    fitting = [d for d in aligned if d * per_row_bytes <= budget]
    cands = fitting if fitting else [min(aligned)]          # best effort
    small = [d for d in cands if d * w_pix <= target_rows] or [min(cands)]
    even_steps = [d for d in small if (bh // d) >= 2 and (bh // d) % 2 == 0]
    multi_steps = [d for d in small if (bh // d) >= 2]
    return max(even_steps or multi_steps or small)


def patch_expand_2d(x, w_expand, ln_gamma, ln_beta, *, dim_scale=2, eps=1e-5,
                    target_rows=None, vmem_limit_bytes=None, matmul_dtype=None):
    """x: (B, H, W, C).  w_expand: (C, dim_scale*C) == torch Linear weight.T.
    ln_gamma / ln_beta: (C // dim_scale,).
    matmul_dtype: optional compute dtype (e.g. jnp.bfloat16) for the expand
    matmul; None keeps the input dtype (f32-exact numerics).
    Returns (B, dim_scale*H, dim_scale*W, C // dim_scale)."""
    B, H, W, C = x.shape
    ds = dim_scale
    c_out = C // ds
    gc = ds * c_out                 # lanes per p1 half (== C)
    n_out = ds * gc                 # full expand width (== dim_scale * C)
    bh = B * H
    m = bh * W
    out_dtype = x.dtype

    # --- generation-aware VMEM limit & tile-size target ----------------------
    try:
        vmem_cap = int(pltpu.get_tpu_info().vmem_capacity_bytes)
    except Exception:
        vmem_cap = 64 * 1024 * 1024        # conservative: v7x has 64 MiB / TC
    if vmem_limit_bytes is None:
        # ~80% of physical VMEM: ~51 MiB on v7x, ~102 MiB on v5e/v6e.
        vmem_limit_bytes = max(32 * 1024 * 1024,
                               min(int(vmem_cap * 0.8), 112 * 1024 * 1024))
    if target_rows is None:
        target_rows = 2048 if vmem_cap > 64 * 1024 * 1024 else 1024

    # --- static kernel configuration ------------------------------------------
    fuse = (gc < 256) or (gc % 128 != 0)   # fuse per-p1 matmuls (fill the MXU)
    fuse_shuffle = (W % 8 == 0)            # fused pixel-shuffle output layout

    w_mat = w_expand.reshape(C, n_out)
    if matmul_dtype is not None:
        w_mat = w_mat.astype(matmul_dtype)
    gamma2 = jnp.tile(ln_gamma.reshape(1, c_out), (1, ds)).astype(jnp.float32)
    beta2 = jnp.tile(ln_beta.reshape(1, c_out), (1, ds)).astype(jnp.float32)

    # --- VMEM-budgeted row tile ------------------------------------------------
    in_sz = jnp.dtype(x.dtype).itemsize
    out_sz = jnp.dtype(out_dtype).itemsize
    w_sz = jnp.dtype(w_mat.dtype).itemsize
    lanes_C = _round_up(C, 128)
    lanes_gc = _round_up(gc, 128)
    lanes_n = _round_up(n_out, 128)

    # Grid-resident operands (single-buffered via pl.Buffered(1)).
    resident = (_round_up(C, 8) * lanes_n * w_sz      # expand weight
                + 2 * 8 * lanes_gc * 4)               # gamma, beta
    headroom = 6 * 1024 * 1024                        # sems + internal scratch

    # Per-image-row (W pixels) cost: double-buffered in/out tiles + the in-kernel
    # f32 working set (matmul result, centered values, broadcast stats, store
    # temps), charged for all p1 iterations (a static unroll does not bound
    # live ranges).
    per_row = 2 * W * lanes_C * in_sz
    if fuse_shuffle:
        per_row += 2 * ds * W * lanes_gc * out_sz
    else:
        per_row += 2 * W * lanes_n * out_sz
    per_row += 4 * W * ((lanes_n if fuse else 0) + 3 * ds * lanes_gc)

    budget = max(vmem_limit_bytes - resident - headroom, per_row)
    tr = _pick_row_tile(bh, W, per_row, target_rows, budget)
    tm = tr * W

    kernel = functools.partial(
        _patch_expand_kernel, tr=tr, w_pix=W, ds=ds, c=c_out, eps=eps,
        fuse=fuse, fuse_shuffle=fuse_shuffle, matmul_dtype=matmul_dtype)

    if fuse_shuffle:
        out_shape = jax.ShapeDtypeStruct((bh, ds, W, gc), out_dtype)
        out_spec = pl.BlockSpec((tr, ds, W, gc), lambda i: (i, 0, 0, 0))
    else:
        out_shape = jax.ShapeDtypeStruct((m, n_out), out_dtype)
        out_spec = pl.BlockSpec((tm, n_out), lambda i: (i, 0))

    def build(const_pipeline_mode):
        kw = ({} if const_pipeline_mode is None
              else {"pipeline_mode": const_pipeline_mode})
        return pl.pallas_call(
            kernel,
            out_shape=out_shape,
            grid_spec=pltpu.PrefetchScalarGridSpec(
                num_scalar_prefetch=0,
                grid=(bh // tr,),
                in_specs=[
                    pl.BlockSpec((tm, C), lambda i: (i, 0)),           # x rows
                    pl.BlockSpec((C, n_out), lambda i: (0, 0), **kw),  # weight
                    pl.BlockSpec((1, gc), lambda i: (0, 0), **kw),     # gamma
                    pl.BlockSpec((1, gc), lambda i: (0, 0), **kw),     # beta
                ],
                out_specs=out_spec,
            ),
            compiler_params=pltpu.CompilerParams(
                dimension_semantics=("parallel",),
                vmem_limit_bytes=vmem_limit_bytes,
            ),
        )

    args = (x.reshape(m, C), w_mat, gamma2, beta2)
    try:
        # Constant-index operands only need a single VMEM copy.
        out = build(pl.Buffered(1))(*args)
    except Exception:
        # TODO(synk): some jax versions reject single-buffered pipeline_mode on
        # the grid pipeline; fall back to default (double) buffering.
        out = build(None)(*args)

    if fuse_shuffle:
        # (bh, p1, W, (p2 c)) flat order equals (B, (h p1), (w p2), c) flat
        # order, so this reshape is metadata-only -- no second HBM pass.
        return out.reshape(B, ds * H, ds * W, c_out)
    # W % 8 != 0 fallback: natural-layout kernel output + one XLA shuffle pass.
    y = out.reshape(B, H, W, ds, ds, c_out)
    y = jnp.transpose(y, (0, 1, 3, 2, 4, 5))
    return y.reshape(B, ds * H, ds * W, c_out)


def patch_expand_2d_ref(x, w_expand, ln_gamma, ln_beta, *, dim_scale=2, eps=1e-5):
    """Pure-JAX reference matching the PyTorch forward."""
    B, H, W, C = x.shape
    c_out = C // dim_scale
    y = jnp.einsum("bhwc,cd->bhwd", x, w_expand)
    y = y.reshape(B, H, W, dim_scale, dim_scale, c_out)
    y = jnp.transpose(y, (0, 1, 3, 2, 4, 5)).reshape(
        B, H * dim_scale, W * dim_scale, c_out)
    mean = jnp.mean(y, axis=-1, keepdims=True)
    var = jnp.mean((y - mean) ** 2, axis=-1, keepdims=True)
    y = (y - mean) * jax.lax.rsqrt(var + eps)
    return y * ln_gamma + ln_beta


if __name__ == "__main__":
    # Module constructed with dim=16, dim_scale=2 -> self.dim = 32 = input C.
    dim = 16
    dim_scale = 2
    C = dim * 2                    # 32
    B, H, W = 2, 8, 8

    key = jax.random.PRNGKey(0)
    kx, kw, kg, kb = jax.random.split(key, 4)

    x = jax.random.normal(kx, (B, H, W, C), dtype=jnp.float32)

    # nn.Linear(C, dim_scale*C, bias=False): torch weight is (2C, C); we keep
    # the transposed (C, 2C) layout so the kernel computes x @ W directly.
    w_expand = (jax.random.normal(kw, (C, dim_scale * C), dtype=jnp.float32)
                * (1.0 / jnp.sqrt(C)))

    c_out = C // dim_scale
    ln_gamma = 1.0 + 0.1 * jax.random.normal(kg, (c_out,), dtype=jnp.float32)
    ln_beta = 0.1 * jax.random.normal(kb, (c_out,), dtype=jnp.float32)

    out = patch_expand_2d(x, w_expand, ln_gamma, ln_beta, dim_scale=dim_scale)
    out = jax.block_until_ready(out)

    ref = patch_expand_2d_ref(x, w_expand, ln_gamma, ln_beta, dim_scale=dim_scale)
    assert out.shape == (B, H * dim_scale, W * dim_scale, c_out), out.shape
    err = float(jnp.max(jnp.abs(out - ref)))
    assert jnp.allclose(out, ref, atol=1e-4, rtol=1e-4), err

    print("KERNEL_OK")
</pallas_src>

<mosaic_0001>
module attributes {stable_mosaic.version = 11 : i64} {
  func.func @_patch_expand_kernel(%arg0: i32, %arg1: memref<64x32xf32, #tpu.memory_space<vmem>>, %arg2: memref<32x64xf32, #tpu.memory_space<vmem>>, %arg3: memref<1x32xf32, #tpu.memory_space<vmem>>, %arg4: memref<1x32xf32, #tpu.memory_space<vmem>>, %arg5: memref<8x2x8x32xf32, #tpu.memory_space<vmem>>) attributes {dimension_semantics = [#tpu.dimension_semantics<parallel>], iteration_bounds = array<i64: 2>, scalar_prefetch = 0 : i64, scratch_operands = 0 : i64, tpu.core_type = #tpu.core_type<tc>, window_params = [{transform_indices = @transform_0, window_bounds = array<i64: 64, 32>}, {pipeline_mode = #tpu.pipeline_mode<synchronous>, transform_indices = @transform_1, window_bounds = array<i64: 32, 64>}, {pipeline_mode = #tpu.pipeline_mode<synchronous>, transform_indices = @transform_2, window_bounds = array<i64: 1, 32>}, {pipeline_mode = #tpu.pipeline_mode<synchronous>, transform_indices = @transform_3, window_bounds = array<i64: 1, 32>}, {transform_indices = @transform_4, window_bounds = array<i64: 8, 2, 8, 32>}]} {
    %c0 = arith.constant 0 : index
    %c0_0 = arith.constant 0 : index
    %0 = vector.load %arg1[%c0, %c0_0] : memref<64x32xf32, #tpu.memory_space<vmem>>, vector<64x32xf32>
    %c0_1 = arith.constant 0 : index
    %c0_2 = arith.constant 0 : index
    %1 = vector.load %arg3[%c0_1, %c0_2] : memref<1x32xf32, #tpu.memory_space<vmem>>, vector<1x32xf32>
    %c0_3 = arith.constant 0 : index
    %c0_4 = arith.constant 0 : index
    %2 = vector.load %arg4[%c0_3, %c0_4] : memref<1x32xf32, #tpu.memory_space<vmem>>, vector<1x32xf32>
    %3 = tpu.iota {dimensions = array<i32: 1>} : vector<64x32xi32>
    %c0_5 = arith.constant 0 : index
    %c0_6 = arith.constant 0 : index
    %4 = vector.load %arg2[%c0_5, %c0_6] : memref<32x64xf32, #tpu.memory_space<vmem>>, vector<32x64xf32>
    %cst = arith.constant dense<0.000000e+00> : vector<64x64xf32>
    %5 = tpu.matmul %0, %4, %cst {dimension_numbers = #tpu.dot_dimension_numbers<[1], [0], [0], [1], [0, 0, 1, 1], [], []>} : vector<64x32xf32>, vector<32x64xf32>, vector<64x64xf32> -> vector<64x64xf32>
    %6 = vector.extract_strided_slice %5 {offsets = [0, 0], sizes = [64, 32], strides = [1, 1]} : vector<64x64xf32> to vector<64x32xf32>
    %7 = vector.extract_strided_slice %6 {offsets = [0, 0], sizes = [64, 16], strides = [1, 1]} : vector<64x32xf32> to vector<64x16xf32>
    %cst_7 = arith.constant dense<0.000000e+00> : vector<64xf32>
    %8 = vector.multi_reduction <add>, %7, %cst_7 [1] : vector<64x16xf32> to vector<64xf32>
    %9 = vector.shape_cast %8 : vector<64xf32> to vector<64x1xf32>
    %cst_8 = arith.constant 1.600000e+01 : f32
    %10 = vector.broadcast %cst_8 : f32 to vector<64x1xf32>
    %11 = arith.divf %9, %10 : vector<64x1xf32>
    %12 = vector.extract_strided_slice %6 {offsets = [0, 16], sizes = [64, 16], strides = [1, 1]} : vector<64x32xf32> to vector<64x16xf32>
    %cst_9 = arith.constant dense<0.000000e+00> : vector<64xf32>
    %13 = vector.multi_reduction <add>, %12, %cst_9 [1] : vector<64x16xf32> to vector<64xf32>
    %14 = vector.shape_cast %13 : vector<64xf32> to vector<64x1xf32>
    %cst_10 = arith.constant 1.600000e+01 : f32
    %15 = vector.broadcast %cst_10 : f32 to vector<64x1xf32>
    %16 = arith.divf %14, %15 : vector<64x1xf32>
    %c16_i32 = arith.constant 16 : i32
    %17 = vector.broadcast %c16_i32 : i32 to vector<64x32xi32>
    %18 = arith.cmpi sge, %3, %17 : vector<64x32xi32>
    %19 = vector.shape_cast %16 : vector<64x1xf32> to vector<64x1xf32>
    %20 = vector.broadcast %19 : vector<64x1xf32> to vector<64x32xf32>
    %21 = vector.shape_cast %11 : vector<64x1xf32> to vector<64x1xf32>
    %22 = vector.broadcast %21 : vector<64x1xf32> to vector<64x32xf32>
    %23 = arith.select %18, %20, %22 : vector<64x32xi1>, vector<64x32xf32>
    %24 = arith.subf %6, %23 : vector<64x32xf32>
    %25 = vector.extract_strided_slice %24 {offsets = [0, 0], sizes = [64, 16], strides = [1, 1]} : vector<64x32xf32> to vector<64x16xf32>
    %26 = arith.mulf %25, %25 : vector<64x16xf32>
    %cst_11 = arith.constant dense<0.000000e+00> : vector<64xf32>
    %27 = vector.multi_reduction <add>, %26, %cst_11 [1] : vector<64x16xf32> to vector<64xf32>
    %28 = vector.shape_cast %27 : vector<64xf32> to vector<64x1xf32>
    %cst_12 = arith.constant 1.600000e+01 : f32
    %29 = vector.broadcast %cst_12 : f32 to vector<64x1xf32>
    %30 = arith.divf %28, %29 : vector<64x1xf32>
    %cst_13 = arith.constant 9.99999974E-6 : f32
    %31 = vector.broadcast %cst_13 : f32 to vector<64x1xf32>
    %32 = arith.addf %30, %31 : vector<64x1xf32>
    %33 = math.rsqrt %32 : vector<64x1xf32>
    %34 = vector.extract_strided_slice %24 {offsets = [0, 16], sizes = [64, 16], strides = [1, 1]} : vector<64x32xf32> to vector<64x16xf32>
    %35 = arith.mulf %34, %34 : vector<64x16xf32>
    %cst_14 = arith.constant dense<0.000000e+00> : vector<64xf32>
    %36 = vector.multi_reduction <add>, %35, %cst_14 [1] : vector<64x16xf32> to vector<64xf32>
    %37 = vector.shape_cast %36 : vector<64xf32> to vector<64x1xf32>
    %cst_15 = arith.constant 1.600000e+01 : f32
    %38 = vector.broadcast %cst_15 : f32 to vector<64x1xf32>
    %39 = arith.divf %37, %38 : vector<64x1xf32>
    %cst_16 = arith.constant 9.99999974E-6 : f32
    %40 = vector.broadcast %cst_16 : f32 to vector<64x1xf32>
    %41 = arith.addf %39, %40 : vector<64x1xf32>
    %42 = math.rsqrt %41 : vector<64x1xf32>
    %c16_i32_17 = arith.constant 16 : i32
    %43 = vector.broadcast %c16_i32_17 : i32 to vector<64x32xi32>
    %44 = arith.cmpi sge, %3, %43 : vector<64x32xi32>
    %45 = vector.shape_cast %42 : vector<64x1xf32> to vector<64x1xf32>
    %46 = vector.broadcast %45 : vector<64x1xf32> to vector<64x32xf32>
    %47 = vector.shape_cast %33 : vector<64x1xf32> to vector<64x1xf32>
    %48 = vector.broadcast %47 : vector<64x1xf32> to vector<64x32xf32>
    %49 = arith.select %44, %46, %48 : vector<64x32xi1>, vector<64x32xf32>
    %50 = arith.mulf %24, %49 : vector<64x32xf32>
    %51 = vector.broadcast %1 : vector<1x32xf32> to vector<64x32xf32>
    %52 = arith.mulf %50, %51 : vector<64x32xf32>
    %53 = vector.broadcast %2 : vector<1x32xf32> to vector<64x32xf32>
    %54 = arith.addf %52, %53 : vector<64x32xf32>
    %55 = vector.shape_cast %54 : vector<64x32xf32> to vector<8x8x32xf32>
    %c0_18 = arith.constant 0 : index
    %c0_19 = arith.constant 0 : index
    %c0_20 = arith.constant 0 : index
    %c0_21 = arith.constant 0 : index
    %56 = vector.load %arg5[%c0_18, %c0_19, %c0_20, %c0_21] : memref<8x2x8x32xf32, #tpu.memory_space<vmem>>, vector<8x1x8x32xf32>
    %57 = vector.shape_cast %56 : vector<8x1x8x32xf32> to vector<8x8x32xf32>
    %58 = vector.shape_cast %55 : vector<8x8x32xf32> to vector<8x1x8x32xf32>
    tpu.vector_store %arg5[%c0_18, %c0_19, %c0_20, %c0_21], %58 {strides = array<i32>} : memref<8x2x8x32xf32, #tpu.memory_space<vmem>>, vector<8x1x8x32xf32>,
    %59 = vector.extract_strided_slice %5 {offsets = [0, 32], sizes = [64, 32], strides = [1, 1]} : vector<64x64xf32> to vector<64x32xf32>
    %60 = vector.extract_strided_slice %59 {offsets = [0, 0], sizes = [64, 16], strides = [1, 1]} : vector<64x32xf32> to vector<64x16xf32>
    %cst_22 = arith.constant dense<0.000000e+00> : vector<64xf32>
    %61 = vector.multi_reduction <add>, %60, %cst_22 [1] : vector<64x16xf32> to vector<64xf32>
    %62 = vector.shape_cast %61 : vector<64xf32> to vector<64x1xf32>
    %cst_23 = arith.constant 1.600000e+01 : f32
    %63 = vector.broadcast %cst_23 : f32 to vector<64x1xf32>
    %64 = arith.divf %62, %63 : vector<64x1xf32>
    %65 = vector.extract_strided_slice %59 {offsets = [0, 16], sizes = [64, 16], strides = [1, 1]} : vector<64x32xf32> to vector<64x16xf32>
    %cst_24 = arith.constant dense<0.000000e+00> : vector<64xf32>
    %66 = vector.multi_reduction <add>, %65, %cst_24 [1] : vector<64x16xf32> to vector<64xf32>
    %67 = vector.shape_cast %66 : vector<64xf32> to vector<64x1xf32>
    %cst_25 = arith.constant 1.600000e+01 : f32
    %68 = vector.broadcast %cst_25 : f32 to vector<64x1xf32>
    %69 = arith.divf %67, %68 : vector<64x1xf32>
    %c16_i32_26 = arith.constant 16 : i32
    %70 = vector.broadcast %c16_i32_26 : i32 to vector<64x32xi32>
    %71 = arith.cmpi sge, %3, %70 : vector<64x32xi32>
    %72 = vector.shape_cast %69 : vector<64x1xf32> to vector<64x1xf32>
    %73 = vector.broadcast %72 : vector<64x1xf32> to vector<64x32xf32>
    %74 = vector.shape_cast %64 : vector<64x1xf32> to vector<64x1xf32>
    %75 = vector.broadcast %74 : vector<64x1xf32> to vector<64x32xf32>
    %76 = arith.select %71, %73, %75 : vector<64x32xi1>, vector<64x32xf32>
    %77 = arith.subf %59, %76 : vector<64x32xf32>
    %78 = vector.extract_strided_slice %77 {offsets = [0, 0], sizes = [64, 16], strides = [1, 1]} : vector<64x32xf32> to vector<64x16xf32>
    %79 = arith.mulf %78, %78 : vector<64x16xf32>
    %cst_27 = arith.constant dense<0.000000e+00> : vector<64xf32>
    %80 = vector.multi_reduction <add>, %79, %cst_27 [1] : vector<64x16xf32> to vector<64xf32>
    %81 = vector.shape_cast %80 : vector<64xf32> to vector<64x1xf32>
    %cst_28 = arith.constant 1.600000e+01 : f32
    %82 = vector.broadcast %cst_28 : f32 to vector<64x1xf32>
    %83 = arith.divf %81, %82 : vector<64x1xf32>
    %cst_29 = arith.constant 9.99999974E-6 : f32
    %84 = vector.broadcast %cst_29 : f32 to vector<64x1xf32>
    %85 = arith.addf %83, %84 : vector<64x1xf32>
    %86 = math.rsqrt %85 : vector<64x1xf32>
    %87 = vector.extract_strided_slice %77 {offsets = [0, 16], sizes = [64, 16], strides = [1, 1]} : vector<64x32xf32> to vector<64x16xf32>
    %88 = arith.mulf %87, %87 : vector<64x16xf32>
    %cst_30 = arith.constant dense<0.000000e+00> : vector<64xf32>
    %89 = vector.multi_reduction <add>, %88, %cst_30 [1] : vector<64x16xf32> to vector<64xf32>
    %90 = vector.shape_cast %89 : vector<64xf32> to vector<64x1xf32>
    %cst_31 = arith.constant 1.600000e+01 : f32
    %91 = vector.broadcast %cst_31 : f32 to vector<64x1xf32>
    %92 = arith.divf %90, %91 : vector<64x1xf32>
    %cst_32 = arith.constant 9.99999974E-6 : f32
    %93 = vector.broadcast %cst_32 : f32 to vector<64x1xf32>
    %94 = arith.addf %92, %93 : vector<64x1xf32>
    %95 = math.rsqrt %94 : vector<64x1xf32>
    %c16_i32_33 = arith.constant 16 : i32
    %96 = vector.broadcast %c16_i32_33 : i32 to vector<64x32xi32>
    %97 = arith.cmpi sge, %3, %96 : vector<64x32xi32>
    %98 = vector.shape_cast %95 : vector<64x1xf32> to vector<64x1xf32>
    %99 = vector.broadcast %98 : vector<64x1xf32> to vector<64x32xf32>
    %100 = vector.shape_cast %86 : vector<64x1xf32> to vector<64x1xf32>
    %101 = vector.broadcast %100 : vector<64x1xf32> to vector<64x32xf32>
    %102 = arith.select %97, %99, %101 : vector<64x32xi1>, vector<64x32xf32>
    %103 = arith.mulf %77, %102 : vector<64x32xf32>
    %104 = vector.broadcast %1 : vector<1x32xf32> to vector<64x32xf32>
    %105 = arith.mulf %103, %104 : vector<64x32xf32>
    %106 = vector.broadcast %2 : vector<1x32xf32> to vector<64x32xf32>
    %107 = arith.addf %105, %106 : vector<64x32xf32>
    %108 = vector.shape_cast %107 : vector<64x32xf32> to vector<8x8x32xf32>
    %c0_34 = arith.constant 0 : index
    %c1 = arith.constant 1 : index
    %c0_35 = arith.constant 0 : index
    %c0_36 = arith.constant 0 : index
    %109 = vector.load %arg5[%c0_34, %c1, %c0_35, %c0_36] : memref<8x2x8x32xf32, #tpu.memory_space<vmem>>, vector<8x1x8x32xf32>
    %110 = vector.shape_cast %109 : vector<8x1x8x32xf32> to vector<8x8x32xf32>
    %111 = vector.shape_cast %108 : vector<8x8x32xf32> to vector<8x1x8x32xf32>
    tpu.vector_store %arg5[%c0_34, %c1, %c0_35, %c0_36], %111 {strides = array<i32>} : memref<8x2x8x32xf32, #tpu.memory_space<vmem>>, vector<8x1x8x32xf32>,
    return
  }
  func.func @transform_0(%arg0: i32) -> (i32, i32) {
    %c0_i32 = arith.constant 0 : i32
    %c0_i32_0 = arith.constant 0 : i32
    return %arg0, %c0_i32 : i32, i32
  }
  func.func @transform_1(%arg0: i32) -> (i32, i32) {
    %c0_i32 = arith.constant 0 : i32
    %c0_i32_0 = arith.constant 0 : i32
    %c0_i32_1 = arith.constant 0 : i32
    return %c0_i32, %c0_i32_0 : i32, i32
  }
  func.func @transform_2(%arg0: i32) -> (i32, i32) {
    %c0_i32 = arith.constant 0 : i32
    %c0_i32_0 = arith.constant 0 : i32
    %c0_i32_1 = arith.constant 0 : i32
    return %c0_i32, %c0_i32_0 : i32, i32
  }
  func.func @transform_3(%arg0: i32) -> (i32, i32) {
    %c0_i32 = arith.constant 0 : i32
    %c0_i32_0 = arith.constant 0 : i32
    %c0_i32_1 = arith.constant 0 : i32
    return %c0_i32, %c0_i32_0 : i32, i32
  }
  func.func @transform_4(%arg0: i32) -> (i32, i32, i32, i32) {
    %c0_i32 = arith.constant 0 : i32
    %c0_i32_0 = arith.constant 0 : i32
    %c0_i32_1 = arith.constant 0 : i32
    %c0_i32_2 = arith.constant 0 : i32
    return %arg0, %c0_i32, %c0_i32_0, %c0_i32_1 : i32, i32, i32, i32
  }
}

module attributes {stable_mosaic.version = 11 : i64} {
  func.func @_patch_expand_kernel(%arg0: i32, %arg1: memref<64x32xf32, #tpu.memory_space<vmem>>, %arg2: memref<32x64xf32, #tpu.memory_space<vmem>>, %arg3: memref<1x32xf32, #tpu.memory_space<vmem>>, %arg4: memref<1x32xf32, #tpu.memory_space<vmem>>, %arg5: memref<8x2x8x32xf32, #tpu.memory_space<vmem>>) attributes {dimension_semantics = [#tpu.dimension_semantics<parallel>], iteration_bounds = array<i64: 2>, scalar_prefetch = 0 : i64, scratch_operands = 0 : i64, tpu.core_type = #tpu.core_type<tc>, window_params = [{transform_indices = @transform_0, window_bounds = array<i64: 64, 32>}, {pipeline_mode = #tpu.pipeline_mode<synchronous>, transform_indices = @transform_1, window_bounds = array<i64: 32, 64>}, {pipeline_mode = #tpu.pipeline_mode<synchronous>, transform_indices = @transform_2, window_bounds = array<i64: 1, 32>}, {pipeline_mode = #tpu.pipeline_mode<synchronous>, transform_indices = @transform_3, window_bounds = array<i64: 1, 32>}, {transform_indices = @transform_4, window_bounds = array<i64: 8, 2, 8, 32>}]} {
    %c0 = arith.constant 0 : index
    %c0_0 = arith.constant 0 : index
    %0 = vector.load %arg1[%c0, %c0_0] : memref<64x32xf32, #tpu.memory_space<vmem>>, vector<64x32xf32>
    %c0_1 = arith.constant 0 : index
    %c0_2 = arith.constant 0 : index
    %1 = vector.load %arg3[%c0_1, %c0_2] : memref<1x32xf32, #tpu.memory_space<vmem>>, vector<1x32xf32>
    %c0_3 = arith.constant 0 : index
    %c0_4 = arith.constant 0 : index
    %2 = vector.load %arg4[%c0_3, %c0_4] : memref<1x32xf32, #tpu.memory_space<vmem>>, vector<1x32xf32>
    %3 = tpu.iota {dimensions = array<i32: 1>} : vector<64x32xi32>
    %c0_5 = arith.constant 0 : index
    %c0_6 = arith.constant 0 : index
    %4 = vector.load %arg2[%c0_5, %c0_6] : memref<32x64xf32, #tpu.memory_space<vmem>>, vector<32x64xf32>
    %cst = arith.constant dense<0.000000e+00> : vector<64x64xf32>
    %5 = tpu.matmul %0, %4, %cst {dimension_numbers = #tpu.dot_dimension_numbers<[1], [0], [0], [1], [0, 0, 1, 1], [], []>} : vector<64x32xf32>, vector<32x64xf32>, vector<64x64xf32> -> vector<64x64xf32>
    %6 = vector.extract_strided_slice %5 {offsets = [0, 0], sizes = [64, 32], strides = [1, 1]} : vector<64x64xf32> to vector<64x32xf32>
    %7 = vector.extract_strided_slice %6 {offsets = [0, 0], sizes = [64, 16], strides = [1, 1]} : vector<64x32xf32> to vector<64x16xf32>
    %cst_7 = arith.constant dense<0.000000e+00> : vector<64xf32>
    %8 = vector.multi_reduction <add>, %7, %cst_7 [1] : vector<64x16xf32> to vector<64xf32>
    %9 = vector.shape_cast %8 : vector<64xf32> to vector<64x1xf32>
    %cst_8 = arith.constant 1.600000e+01 : f32
    %10 = vector.broadcast %cst_8 : f32 to vector<64x1xf32>
    %11 = arith.divf %9, %10 : vector<64x1xf32>
    %12 = vector.extract_strided_slice %6 {offsets = [0, 16], sizes = [64, 16], strides = [1, 1]} : vector<64x32xf32> to vector<64x16xf32>
    %cst_9 = arith.constant dense<0.000000e+00> : vector<64xf32>
    %13 = vector.multi_reduction <add>, %12, %cst_9 [1] : vector<64x16xf32> to vector<64xf32>
    %14 = vector.shape_cast %13 : vector<64xf32> to vector<64x1xf32>
    %cst_10 = arith.constant 1.600000e+01 : f32
    %15 = vector.broadcast %cst_10 : f32 to vector<64x1xf32>
    %16 = arith.divf %14, %15 : vector<64x1xf32>
    %c16_i32 = arith.constant 16 : i32
    %17 = vector.broadcast %c16_i32 : i32 to vector<64x32xi32>
    %18 = arith.cmpi sge, %3, %17 : vector<64x32xi32>
    %19 = vector.shape_cast %16 : vector<64x1xf32> to vector<64x1xf32>
    %20 = vector.broadcast %19 : vector<64x1xf32> to vector<64x32xf32>
    %21 = vector.shape_cast %11 : vector<64x1xf32> to vector<64x1xf32>
    %22 = vector.broadcast %21 : vector<64x1xf32> to vector<64x32xf32>
    %23 = arith.select %18, %20, %22 : vector<64x32xi1>, vector<64x32xf32>
    %24 = arith.subf %6, %23 : vector<64x32xf32>
    %25 = vector.extract_strided_slice %24 {offsets = [0, 0], sizes = [64, 16], strides = [1, 1]} : vector<64x32xf32> to vector<64x16xf32>
    %26 = arith.mulf %25, %25 : vector<64x16xf32>
    %cst_11 = arith.constant dense<0.000000e+00> : vector<64xf32>
    %27 = vector.multi_reduction <add>, %26, %cst_11 [1] : vector<64x16xf32> to vector<64xf32>
    %28 = vector.shape_cast %27 : vector<64xf32> to vector<64x1xf32>
    %cst_12 = arith.constant 1.600000e+01 : f32
    %29 = vector.broadcast %cst_12 : f32 to vector<64x1xf32>
    %30 = arith.divf %28, %29 : vector<64x1xf32>
    %cst_13 = arith.constant 9.99999974E-6 : f32
    %31 = vector.broadcast %cst_13 : f32 to vector<64x1xf32>
    %32 = arith.addf %30, %31 : vector<64x1xf32>
    %33 = math.rsqrt %32 : vector<64x1xf32>
    %34 = vector.extract_strided_slice %24 {offsets = [0, 16], sizes = [64, 16], strides = [1, 1]} : vector<64x32xf32> to vector<64x16xf32>
    %35 = arith.mulf %34, %34 : vector<64x16xf32>
    %cst_14 = arith.constant dense<0.000000e+00> : vector<64xf32>
    %36 = vector.multi_reduction <add>, %35, %cst_14 [1] : vector<64x16xf32> to vector<64xf32>
    %37 = vector.shape_cast %36 : vector<64xf32> to vector<64x1xf32>
    %cst_15 = arith.constant 1.600000e+01 : f32
    %38 = vector.broadcast %cst_15 : f32 to vector<64x1xf32>
    %39 = arith.divf %37, %38 : vector<64x1xf32>
    %cst_16 = arith.constant 9.99999974E-6 : f32
    %40 = vector.broadcast %cst_16 : f32 to vector<64x1xf32>
    %41 = arith.addf %39, %40 : vector<64x1xf32>
    %42 = math.rsqrt %41 : vector<64x1xf32>
    %c16_i32_17 = arith.constant 16 : i32
    %43 = vector.broadcast %c16_i32_17 : i32 to vector<64x32xi32>
    %44 = arith.cmpi sge, %3, %43 : vector<64x32xi32>
    %45 = vector.shape_cast %42 : vector<64x1xf32> to vector<64x1xf32>
    %46 = vector.broadcast %45 : vector<64x1xf32> to vector<64x32xf32>
    %47 = vector.shape_cast %33 : vector<64x1xf32> to vector<64x1xf32>
    %48 = vector.broadcast %47 : vector<64x1xf32> to vector<64x32xf32>
    %49 = arith.select %44, %46, %48 : vector<64x32xi1>, vector<64x32xf32>
    %50 = arith.mulf %24, %49 : vector<64x32xf32>
    %51 = vector.broadcast %1 : vector<1x32xf32> to vector<64x32xf32>
    %52 = arith.mulf %50, %51 : vector<64x32xf32>
    %53 = vector.broadcast %2 : vector<1x32xf32> to vector<64x32xf32>
    %54 = arith.addf %52, %53 : vector<64x32xf32>
    %55 = vector.shape_cast %54 : vector<64x32xf32> to vector<8x8x32xf32>
    %c0_18 = arith.constant 0 : index
    %c0_19 = arith.constant 0 : index
    %c0_20 = arith.constant 0 : index
    %c0_21 = arith.constant 0 : index
    %56 = vector.load %arg5[%c0_18, %c0_19, %c0_20, %c0_21] : memref<8x2x8x32xf32, #tpu.memory_space<vmem>>, vector<8x1x8x32xf32>
    %57 = vector.shape_cast %56 : vector<8x1x8x32xf32> to vector<8x8x32xf32>
    %58 = vector.shape_cast %55 : vector<8x8x32xf32> to vector<8x1x8x32xf32>
    tpu.vector_store %arg5[%c0_18, %c0_19, %c0_20, %c0_21], %58 {strides = array<i32>} : memref<8x2x8x32xf32, #tpu.memory_space<vmem>>, vector<8x1x8x32xf32>,
    %59 = vector.extract_strided_slice %5 {offsets = [0, 32], sizes = [64, 32], strides = [1, 1]} : vector<64x64xf32> to vector<64x32xf32>
    %60 = vector.extract_strided_slice %59 {offsets = [0, 0], sizes = [64, 16], strides = [1, 1]} : vector<64x32xf32> to vector<64x16xf32>
    %cst_22 = arith.constant dense<0.000000e+00> : vector<64xf32>
    %61 = vector.multi_reduction <add>, %60, %cst_22 [1] : vector<64x16xf32> to vector<64xf32>
    %62 = vector.shape_cast %61 : vector<64xf32> to vector<64x1xf32>
    %cst_23 = arith.constant 1.600000e+01 : f32
    %63 = vector.broadcast %cst_23 : f32 to vector<64x1xf32>
    %64 = arith.divf %62, %63 : vector<64x1xf32>
    %65 = vector.extract_strided_slice %59 {offsets = [0, 16], sizes = [64, 16], strides = [1, 1]} : vector<64x32xf32> to vector<64x16xf32>
    %cst_24 = arith.constant dense<0.000000e+00> : vector<64xf32>
    %66 = vector.multi_reduction <add>, %65, %cst_24 [1] : vector<64x16xf32> to vector<64xf32>
    %67 = vector.shape_cast %66 : vector<64xf32> to vector<64x1xf32>
    %cst_25 = arith.constant 1.600000e+01 : f32
    %68 = vector.broadcast %cst_25 : f32 to vector<64x1xf32>
    %69 = arith.divf %67, %68 : vector<64x1xf32>
    %c16_i32_26 = arith.constant 16 : i32
    %70 = vector.broadcast %c16_i32_26 : i32 to vector<64x32xi32>
    %71 = arith.cmpi sge, %3, %70 : vector<64x32xi32>
    %72 = vector.shape_cast %69 : vector<64x1xf32> to vector<64x1xf32>
    %73 = vector.broadcast %72 : vector<64x1xf32> to vector<64x32xf32>
    %74 = vector.shape_cast %64 : vector<64x1xf32> to vector<64x1xf32>
    %75 = vector.broadcast %74 : vector<64x1xf32> to vector<64x32xf32>
    %76 = arith.select %71, %73, %75 : vector<64x32xi1>, vector<64x32xf32>
    %77 = arith.subf %59, %76 : vector<64x32xf32>
    %78 = vector.extract_strided_slice %77 {offsets = [0, 0], sizes = [64, 16], strides = [1, 1]} : vector<64x32xf32> to vector<64x16xf32>
    %79 = arith.mulf %78, %78 : vector<64x16xf32>
    %cst_27 = arith.constant dense<0.000000e+00> : vector<64xf32>
    %80 = vector.multi_reduction <add>, %79, %cst_27 [1] : vector<64x16xf32> to vector<64xf32>
    %81 = vector.shape_cast %80 : vector<64xf32> to vector<64x1xf32>
    %cst_28 = arith.constant 1.600000e+01 : f32
    %82 = vector.broadcast %cst_28 : f32 to vector<64x1xf32>
    %83 = arith.divf %81, %82 : vector<64x1xf32>
    %cst_29 = arith.constant 9.99999974E-6 : f32
    %84 = vector.broadcast %cst_29 : f32 to vector<64x1xf32>
    %85 = arith.addf %83, %84 : vector<64x1xf32>
    %86 = math.rsqrt %85 : vector<64x1xf32>
    %87 = vector.extract_strided_slice %77 {offsets = [0, 16], sizes = [64, 16], strides = [1, 1]} : vector<64x32xf32> to vector<64x16xf32>
    %88 = arith.mulf %87, %87 : vector<64x16xf32>
    %cst_30 = arith.constant dense<0.000000e+00> : vector<64xf32>
    %89 = vector.multi_reduction <add>, %88, %cst_30 [1] : vector<64x16xf32> to vector<64xf32>
    %90 = vector.shape_cast %89 : vector<64xf32> to vector<64x1xf32>
    %cst_31 = arith.constant 1.600000e+01 : f32
    %91 = vector.broadcast %cst_31 : f32 to vector<64x1xf32>
    %92 = arith.divf %90, %91 : vector<64x1xf32>
    %cst_32 = arith.constant 9.99999974E-6 : f32
    %93 = vector.broadcast %cst_32 : f32 to vector<64x1xf32>
    %94 = arith.addf %92, %93 : vector<64x1xf32>
    %95 = math.rsqrt %94 : vector<64x1xf32>
    %c16_i32_33 = arith.constant 16 : i32
    %96 = vector.broadcast %c16_i32_33 : i32 to vector<64x32xi32>
    %97 = arith.cmpi sge, %3, %96 : vector<64x32xi32>
    %98 = vector.shape_cast %95 : vector<64x1xf32> to vector<64x1xf32>
    %99 = vector.broadcast %98 : vector<64x1xf32> to vector<64x32xf32>
    %100 = vector.shape_cast %86 : vector<64x1xf32> to vector<64x1xf32>
    %101 = vector.broadcast %100 : vector<64x1xf32> to vector<64x32xf32>
    %102 = arith.select %97, %99, %101 : vector<64x32xi1>, vector<64x32xf32>
    %103 = arith.mulf %77, %102 : vector<64x32xf32>
    %104 = vector.broadcast %1 : vector<1x32xf32> to vector<64x32xf32>
    %105 = arith.mulf %103, %104 : vector<64x32xf32>
    %106 = vector.broadcast %2 : vector<1x32xf32> to vector<64x32xf32>
    %107 = arith.addf %105, %106 : vector<64x32xf32>
    %108 = vector.shape_cast %107 : vector<64x32xf32> to vector<8x8x32xf32>
    %c0_34 = arith.constant 0 : index
    %c1 = arith.constant 1 : index
    %c0_35 = arith.constant 0 : index
    %c0_36 = arith.constant 0 : index
    %109 = vector.load %arg5[%c0_34, %c1, %c0_35, %c0_36] : memref<8x2x8x32xf32, #tpu.memory_space<vmem>>, vector<8x1x8x32xf32>
    %110 = vector.shape_cast %109 : vector<8x1x8x32xf32> to vector<8x8x32xf32>
    %111 = vector.shape_cast %108 : vector<8x8x32xf32> to vector<8x1x8x32xf32>
    tpu.vector_store %arg5[%c0_34, %c1, %c0_35, %c0_36], %111 {strides = array<i32>} : memref<8x2x8x32xf32, #tpu.memory_space<vmem>>, vector<8x1x8x32xf32>,
    return
  }
  func.func @transform_0(%arg0: i32) -> (i32, i32) {
    %c0_i32 = arith.constant 0 : i32
    %c0_i32_0 = arith.constant 0 : i32
    return %arg0, %c0_i32 : i32, i32
  }
  func.func @transform_1(%arg0: i32) -> (i32, i32) {
    %c0_i32 = arith.constant 0 : i32
    %c0_i32_0 = arith.constant 0 : i32
    %c0_i32_1 = arith.constant 0 : i32
    return %c0_i32, %c0_i32_0 : i32, i32
  }
  func.func @transform_2(%arg0: i32) -> (i32, i32) {
    %c0_i32 = arith.constant 0 : i32
    %c0_i32_0 = arith.constant 0 : i32
    %c0_i32_1 = arith.constant 0 : i32
    return %c0_i32, %c0_i32_0 : i32, i32
  }
  func.func @transform_3(%arg0: i32) -> (i32, i32) {
    %c0_i32 = arith.constant 0 : i32
    %c0_i32_0 = arith.constant 0 : i32
    %c0_i32_1 = arith.constant 0 : i32
    return %c0_i32, %c0_i32_0 : i32, i32
  }
  func.func @transform_4(%arg0: i32) -> (i32, i32, i32, i32) {
    %c0_i32 = arith.constant 0 : i32
    %c0_i32_0 = arith.constant 0 : i32
    %c0_i32_1 = arith.constant 0 : i32
    %c0_i32_2 = arith.constant 0 : i32
    return %arg0, %c0_i32, %c0_i32_0, %c0_i32_1 : i32, i32, i32, i32
  }
}

</mosaic_0001>

<llo_original>
// kernel: tpu_custom_call.1
$region0: #{tpu_custom_call.1}
  #allocation0 [shape = 'u32[]', space=smem, size = 0x4, offset = 0x4, fixed_abs, tag = 'smem constant byte address 0x4 - core index']
  #allocation1 [shape = 'u32[144,128]{1,0:T(1,128)}', space=vmem, size = 0x12000, scoped, tag = 'internal scratch']
  %s0 = inlined_call_operand.vmem [shape: f32[128,32], index: 0, kind: input, shape index: {}]
  %s1 = inlined_call_operand.vmem [shape: f32[32,64], index: 1, kind: input, shape index: {}]
  %s2 = inlined_call_operand.vmem [shape: f32[1,32], index: 2, kind: input, shape index: {}]
  %s3 = inlined_call_operand.vmem [shape: f32[1,32], index: 3, kind: input, shape index: {}]
  %s4 = inlined_call_operand.hbm [shape: f32[16,2,8,32], index: 4, kind: output, shape index: {}]
  %s5 = sld [smem:[#allocation0]]
  $region49: #{tpu_custom_call.1} parent=0
    _
  %s7 = ssub.s32 1, %s5
  %s8 = scalar_select 0, %s7, %s5
  $region1: #{tpu_custom_call.1} parent=0
    #allocation2 [shape = 'u8[131072]{0}', space=vmem, size = 0x20000, scoped, tag = 'output window, operand 0']
    #allocation3 [shape = 's32[2]{0}', space=sflag, size = 0x8, scoped, tag = 'scoped memory for tpu_custom_call.1']
    %9 = vsyncpa [#allocation3], 0
    %s10 = scalar_lea.sflag [#allocation3], 1
    %11 = vsyncpa %s10, 0
    loop: start=0, step=1, limit=4
    $region2: #{tpu_custom_call.1} parent=1 // loop_pre_header
      _
    $region3: #{tpu_custom_call.1} parent=1 // loop_header
      %s13 = sphi 0, %s17
      %p14 = scmp.ge.s32.totalorder %s13, 4
      %s23 = sphi 0, %s25
      %s26 = sphi 0, %s23
      %s27 = sphi 0, %s26
      %s43 = sphi 0, %s27
      %s47 = sphi 0, %s47
      %s49 = sphi 0, %s47
      %s50 = sphi 0, %s49
      %s64 = sphi 0, %s50
      %s68 = sphi 0, %s68
      %s70 = sphi 0, %s68
      %s71 = sphi 0, %s70
      %s85 = sphi 0, %s71
      %s89 = sphi 0, %s89
      %s91 = sphi 0, %s89
      %s92 = sphi 0, %s91
      %s106 = sphi 0, %s92
      %s112 = sphi 0, %s114
      %s115 = sphi 0, %s112
      %s116 = sphi 0, %s115
      %s132 = sphi 0, %s116
    $region4: #{tpu_custom_call.1} parent=1 // loop_header_branch
      %16 = sbr.rel (%p14) target = $region8
    $region5: #{tpu_custom_call.1} parent=1 // loop_body
      %s18 = ssub.s32 %s13, 1
      %s19 = ssub.s32 %s13, 2
      %s20 = sadd.s32 %s13, 1
      %s21 = ssub.s32 %s13, %s20
      %p22 = scmp.eq.s32.totalorder %s21, 0
      %s24 = sadd.s32 %s23, 1
      %s25 = scalar_select %p22, %s23, %s24
      %p28 = pneg %p22
      %p29 = scmp.eq.s32.totalorder %s13, 1
      %p30 = por %p28, %p29
      %p31 = scmp.ne.s32.totalorder %s23, %s26
      %p32 = scmp.eq.s32.totalorder %s13, 0
      %p33 = por %p31, %p32
      %p34 = scmp.ne.s32.totalorder %s23, %s26
      %p35 = scmp.eq.s32.totalorder %s18, 1
      %p36 = por %p34, %p35
      %p37 = scmp.ne.s32.totalorder %s26, %s27
      %p38 = scmp.eq.s32.totalorder %s18, 0
      %p39 = por %p37, %p38
      %p40 = scmp.ne.s32.totalorder %s26, %s27
      %p41 = scmp.eq.s32.totalorder %s19, 1
      %p42 = por %p40, %p41
      %p44 = scmp.ne.s32.totalorder %s27, %s43
      %p45 = scmp.eq.s32.totalorder %s19, 0
      %p46 = por %p44, %p45
      %s48 = sadd.s32 %s47, 1
      %p51 = scmp.eq.s32.totalorder %s13, 1
      %p52 = scmp.ne.s32.totalorder %s47, %s49
      %p53 = scmp.eq.s32.totalorder %s13, 0
      %p54 = por %p52, %p53
      %p55 = scmp.ne.s32.totalorder %s47, %s49
      %p56 = scmp.eq.s32.totalorder %s18, 1
      %p57 = por %p55, %p56
      %p58 = scmp.ne.s32.totalorder %s49, %s50
      %p59 = scmp.eq.s32.totalorder %s18, 0
      %p60 = por %p58, %p59
      %p61 = scmp.ne.s32.totalorder %s49, %s50
      %p62 = scmp.eq.s32.totalorder %s19, 1
      %p63 = por %p61, %p62
      %p65 = scmp.ne.s32.totalorder %s50, %s64
      %p66 = scmp.eq.s32.totalorder %s19, 0
      %p67 = por %p65, %p66
      %s69 = sadd.s32 %s68, 1
      %p72 = scmp.eq.s32.totalorder %s13, 1
      %p73 = scmp.ne.s32.totalorder %s68, %s70
      %p74 = scmp.eq.s32.totalorder %s13, 0
      %p75 = por %p73, %p74
      %p76 = scmp.ne.s32.totalorder %s68, %s70
      %p77 = scmp.eq.s32.totalorder %s18, 1
      %p78 = por %p76, %p77
      %p79 = scmp.ne.s32.totalorder %s70, %s71
      %p80 = scmp.eq.s32.totalorder %s18, 0
      %p81 = por %p79, %p80
      %p82 = scmp.ne.s32.totalorder %s70, %s71
      %p83 = scmp.eq.s32.totalorder %s19, 1
      %p84 = por %p82, %p83
      %p86 = scmp.ne.s32.totalorder %s71, %s85
      %p87 = scmp.eq.s32.totalorder %s19, 0
      %p88 = por %p86, %p87
      %s90 = sadd.s32 %s89, 1
      %p93 = scmp.eq.s32.totalorder %s13, 1
      %p94 = scmp.ne.s32.totalorder %s89, %s91
      %p95 = scmp.eq.s32.totalorder %s13, 0
      %p96 = por %p94, %p95
      %p97 = scmp.ne.s32.totalorder %s89, %s91
      %p98 = scmp.eq.s32.totalorder %s18, 1
      %p99 = por %p97, %p98
      %p100 = scmp.ne.s32.totalorder %s91, %s92
      %p101 = scmp.eq.s32.totalorder %s18, 0
      %p102 = por %p100, %p101
      %p103 = scmp.ne.s32.totalorder %s91, %s92
      %p104 = scmp.eq.s32.totalorder %s19, 1
      %p105 = por %p103, %p104
      %p107 = scmp.ne.s32.totalorder %s92, %s106
      %p108 = scmp.eq.s32.totalorder %s19, 0
      %p109 = por %p107, %p108
      %s110 = ssub.s32 %s13, %s20
      %p111 = scmp.eq.s32.totalorder %s110, 0
      %s113 = sadd.s32 %s112, 1
      %s114 = scalar_select %p111, %s112, %s113
      %p117 = pneg %p111
      %p118 = scmp.eq.s32.totalorder %s13, 1
      %p119 = por %p117, %p118
      %p120 = scmp.ne.s32.totalorder %s112, %s115
      %p121 = scmp.eq.s32.totalorder %s13, 0
      %p122 = por %p120, %p121
      %p123 = scmp.ne.s32.totalorder %s112, %s115
      %p124 = scmp.eq.s32.totalorder %s18, 1
      %p125 = por %p123, %p124
      %p126 = scmp.ne.s32.totalorder %s115, %s116
      %p127 = scmp.eq.s32.totalorder %s18, 0
      %p128 = por %p126, %p127
      %p129 = scmp.ne.s32.totalorder %s115, %s116
      %p130 = scmp.eq.s32.totalorder %s19, 1
      %p131 = por %p129, %p130
      %p133 = scmp.ne.s32.totalorder %s116, %s132
      %p134 = scmp.eq.s32.totalorder %s19, 0
      %p135 = por %p133, %p134
      %p136 = scmp.le.s32.totalorder 1, %s13
      %p137 = scmp.lt.s32.totalorder %s13, 3
      %p138 = pnand %p136, %p137
      %p139 = pneg %p138
      // Predicated region
      $region9: #{tpu_custom_call.1} parent=5 // pred_check
        _
      $region10: #{tpu_custom_call.1} parent=5 // pred_check_branch
        %141 = sbr.rel (%p138) target = $region12
      $region11: #{tpu_custom_call.1} parent=5 // pred_region
        %s142 = ssub.s32 %s13, 1
        // Predicated region
        $region13: #{tpu_custom_call.1} parent=11 // pred_check
          %p143 = pneg %p60
        $region14: #{tpu_custom_call.1} parent=11 // pred_check_branch
          %145 = sbr.rel (%p143) target = $region16
        $region15: #{tpu_custom_call.1} parent=11 // pred_region
          _
        $region16: #{tpu_custom_call.1} parent=11 // pred_fallthru
          _
        // Predicated region
        $region17: #{tpu_custom_call.1} parent=11 // pred_check
          %p146 = pneg %p81
        $region18: #{tpu_custom_call.1} parent=11 // pred_check_branch
          %148 = sbr.rel (%p146) target = $region20
        $region19: #{tpu_custom_call.1} parent=11 // pred_region
          _
        $region20: #{tpu_custom_call.1} parent=11 // pred_fallthru
          _
        // Predicated region
        $region21: #{tpu_custom_call.1} parent=11 // pred_check
          %p149 = pneg %p102
        $region22: #{tpu_custom_call.1} parent=11 // pred_check_branch
          %151 = sbr.rel (%p149) target = $region24
        $region23: #{tpu_custom_call.1} parent=11 // pred_region
          _
        $region24: #{tpu_custom_call.1} parent=11 // pred_fallthru
          _
      $region12: #{tpu_custom_call.1} parent=5 // pred_fallthru
        _
      %p152 = scmp.lt.s32.totalorder %s13, 2
      // Predicated region
      $region25: #{tpu_custom_call.1} parent=5 // pred_check
        %p153 = pneg %p152
      $region26: #{tpu_custom_call.1} parent=5 // pred_check_branch
        %155 = sbr.rel (%p153) target = $region28
      $region27: #{tpu_custom_call.1} parent=5 // pred_region
        // Predicated region
        $region29: #{tpu_custom_call.1} parent=27 // pred_check
          %p156 = pneg %p33
        $region30: #{tpu_custom_call.1} parent=27 // pred_check_branch
          %158 = sbr.rel (%p156) target = $region32
        $region31: #{tpu_custom_call.1} parent=27 // pred_region
          %s159 = smul.u32 8, %s13
          %p160 = scmp.lt.s32.totalorder %s159, 15
          %s161 = scalar_select %p160, %s159, 15
          %s162 = smul.addr %s161, 8
          %s163 = scalar_lea.vmem %s0, %s162
          %s164 = smul.u32 8, %s13
        $region32: #{tpu_custom_call.1} parent=27 // pred_fallthru
          _
      $region28: #{tpu_custom_call.1} parent=5 // pred_fallthru
        _
      %p165 = scmp.le.s32.totalorder 1, %s13
      %p166 = scmp.lt.s32.totalorder %s13, 3
      %p167 = pnand %p165, %p166
      %p168 = pneg %p167
      // Predicated region
      $region33: #{tpu_custom_call.1} parent=5 // pred_check
        _
      $region34: #{tpu_custom_call.1} parent=5 // pred_check_branch
        %170 = sbr.rel (%p167) target = $region36
      $region35: #{tpu_custom_call.1} parent=5 // pred_region
        %s171 = ssub.s32 %s13, 1
        %s172 = smul.u32 8, %s18
        %p173 = scmp.lt.s32.totalorder %s172, 15
        %s174 = scalar_select %p173, %s172, 15
        %s175 = smul.addr %s174, 8
        %s176 = scalar_lea.vmem %s0, %s175
        %p177 = pneg %p39
        %p178 = pneg %p36
        %p179 = pneg %p60
        %p180 = pneg %p57
        %p181 = pneg %p81
        %p182 = pneg %p78
        %p183 = pneg %p102
        %p184 = pneg %p99
        %p185 = pneg %p128
        %p186 = pneg %p125
        %s187 = sand.u32 %s115, 1
        %s188 = scalar_lea.sflag [#allocation3], %s187
        %s189 = sand.u32 %s115, 1
        %s190 = smul.addr %s189, 128
        %s191 = scalar_lea.vmem [#allocation2], %s190
        %s192 = smul.u32 8, %s18
        %p193 = scmp.lt.s32.totalorder %s192, 15
        %s194 = scalar_select %p193, %s192, 15
        %s195 = smul.addr %s194, 8
        %s196 = scalar_lea.vmem %s0, %s195
        %s197 = smul.u32 8, %s18
        %s198 = smul.u32 8, %s18
        %v199 = vld [vmem:[%s196] sm:$0xff]
        %v200 = vld [vmem:[%s196 + $0x8] sm:$0xff]
        %v201 = vld [vmem:[%s196 + $0x10] sm:$0xff]
        %v202 = vld [vmem:[%s196 + $0x18] sm:$0xff]
        %v203 = vld [vmem:[%s196 + $0x20] sm:$0xff]
        %v204 = vld [vmem:[%s196 + $0x28] sm:$0xff]
        %v205 = vld [vmem:[%s196 + $0x30] sm:$0xff]
        %v206 = vld [vmem:[%s196 + $0x38] sm:$0xff]
        %v207 = vld [vmem:[%s2] sm:$0x1]
        %v208 = vld [vmem:[%s3] sm:$0x1]
        %v209 = vlaneseq
        %v210 = vand.u32 %v209, 127
        %v211 = vld [vmem:[%s1] sm:$0xff]
        %v212 = vld [vmem:[%s1 + $0x8] sm:$0xff]
        %v213 = vld [vmem:[%s1 + $0x10] sm:$0xff]
        %v214 = vld [vmem:[%s1 + $0x18] sm:$0xff]
        %vm215 = vcmask 261120
        %v217 = vsel %vm215, %v199, 0
        %v220 = vsel %vm215, %v200, 0
        %v223 = vsel %vm215, %v201, 0
        %v226 = vsel %vm215, %v202, 0
        %v229 = vsel %vm215, %v203, 0
        %v232 = vsel %vm215, %v204, 0
        %v235 = vsel %vm215, %v205, 0
        %v238 = vsel %vm215, %v206, 0
        %240 = vmatprep.subr.mxu0 0.0
        %241 = vmatpush1.msra.mxu0 %v211
        %242 = vmatprep.subr.mxu0 0.0
        %243 = vmatpush1.msra.mxu0 %v212
        %244 = vmatprep.subr.mxu0 0.0
        %245 = vmatpush1.msra.mxu0 %v213
        %246 = vmatprep.subr.mxu0 0.0
        %247 = vmatpush1.msra.mxu0 %v214
        %248 = vmatprep.subr.mxu0 0.0
        %249 = vmatpush1.msra.mxu0 0.0
        %250 = vmatprep.subr.mxu0 0.0
        %251 = vmatpush1.msra.mxu0 0.0
        %252 = vmatprep.subr.mxu0 0.0
        %253 = vmatpush1.msra.mxu0 0.0
        %254 = vmatprep.subr.mxu0 0.0
        %255 = vmatpush1.msra.mxu0 0.0
        %256 = vmatprep.subr.mxu0 0.0
        %257 = vmatpush1.msra.mxu0 0.0
        %258 = vmatprep.subr.mxu0 0.0
        %259 = vmatpush1.msra.mxu0 0.0
        %260 = vmatprep.subr.mxu0 0.0
        %261 = vmatpush1.msra.mxu0 0.0
        %262 = vmatprep.subr.mxu0 0.0
        %263 = vmatpush1.msra.mxu0 0.0
        %264 = vmatprep.subr.mxu0 0.0
        %265 = vmatpush1.msra.mxu0 0.0
        %266 = vmatprep.subr.mxu0 0.0
        %267 = vmatpush1.msra.mxu0 0.0
        %268 = vmatprep.subr.mxu0 0.0
        %269 = vmatpush1.msra.mxu0 0.0
        %270 = vmatprep.subr.mxu0 0.0
        %271 = vmatpush1.msra.mxu0 0.0
        %272 = vmatprep.subr.mxu0 0.0
        %273 = vmatpush1.msra.mxu0 0.0
        %274 = vmatprep.subr.mxu0 0.0
        %275 = vmatpush1.msra.mxu0 0.0
        %276 = vmatprep.subr.mxu0 0.0
        %277 = vmatpush1.msra.mxu0 0.0
        %278 = vmatprep.subr.mxu0 0.0
        %279 = vmatpush1.msra.mxu0 0.0
        %280 = vmatprep.subr.mxu0 0.0
        %281 = vmatpush1.msra.mxu0 0.0
        %282 = vmatprep.subr.mxu0 0.0
        %283 = vmatpush1.msra.mxu0 0.0
        %284 = vmatprep.subr.mxu0 0.0
        %285 = vmatpush1.msra.mxu0 0.0
        %286 = vmatprep.subr.mxu0 0.0
        %287 = vmatpush1.msra.mxu0 0.0
        %288 = vmatprep.subr.mxu0 0.0
        %289 = vmatpush1.msra.mxu0 0.0
        %290 = vmatprep.subr.mxu0 0.0
        %291 = vmatpush1.msra.mxu0 0.0
        %292 = vmatprep.subr.mxu0 0.0
        %293 = vmatpush1.msra.mxu0 0.0
        %294 = vmatprep.subr.mxu0 0.0
        %295 = vmatpush1.msra.mxu0 0.0
        %296 = vmatprep.subr.mxu0 0.0
        %297 = vmatpush1.msra.mxu0 0.0
        %298 = vmatprep.subr.mxu0 0.0
        %299 = vmatpush1.msra.mxu0 0.0
        %300 = vmatprep.subr.mxu0 0.0
        %301 = vmatpush1.msra.mxu0 0.0
        %302 = vmatprep.subr.mxu0 0.0
        %303 = vmatpush1.msra.mxu0 0.0
        %304 = vmatprep.mubr.f32.mxu0 0.0
        %305 = vmatmul.mubr.f32.gmra.mrb[0].mxu0 %v217
        %v306 = vpop.f32.mrb[0].mxu0
        %v307 = vadd.f32 0.0, %v306
        %v308 = vpop.f32.mrb[0].mxu0
        %309 = vmatprep.mubr.f32.mxu0 0.0
        %310 = vmatmul.mubr.f32.gmra.mrb[0].mxu0 %v220
        %v311 = vpop.f32.mrb[0].mxu0
        %v312 = vadd.f32 0.0, %v311
        %v313 = vpop.f32.mrb[0].mxu0
        %314 = vmatprep.mubr.f32.mxu0 0.0
        %315 = vmatmul.mubr.f32.gmra.mrb[0].mxu0 %v223
        %v316 = vpop.f32.mrb[0].mxu0
        %v317 = vadd.f32 0.0, %v316
        %v318 = vpop.f32.mrb[0].mxu0
        %319 = vmatprep.mubr.f32.mxu0 0.0
        %320 = vmatmul.mubr.f32.gmra.mrb[0].mxu0 %v226
        %v321 = vpop.f32.mrb[0].mxu0
        %v322 = vadd.f32 0.0, %v321
        %v323 = vpop.f32.mrb[0].mxu0
        %324 = vmatprep.mubr.f32.mxu0 0.0
        %325 = vmatmul.mubr.f32.gmra.mrb[0].mxu0 %v229
        %v326 = vpop.f32.mrb[0].mxu0
        %v327 = vadd.f32 0.0, %v326
        %v328 = vpop.f32.mrb[0].mxu0
        %329 = vmatprep.mubr.f32.mxu0 0.0
        %330 = vmatmul.mubr.f32.gmra.mrb[0].mxu0 %v232
        %v331 = vpop.f32.mrb[0].mxu0
        %v332 = vadd.f32 0.0, %v331
        %v333 = vpop.f32.mrb[0].mxu0
        %334 = vmatprep.mubr.f32.mxu0 0.0
        %335 = vmatmul.mubr.f32.gmra.mrb[0].mxu0 %v235
        %v336 = vpop.f32.mrb[0].mxu0
        %v337 = vadd.f32 0.0, %v336
        %v338 = vpop.f32.mrb[0].mxu0
        %339 = vmatprep.mubr.f32.mxu0 0.0
        %340 = vmatmul.mubr.f32.gmra.mrb[0].mxu0 %v238
        %v341 = vpop.f32.mrb[0].mxu0
        %v342 = vadd.f32 0.0, %v341
        %v343 = vpop.f32.mrb[0].mxu0
        %344 = vdwg.mxu0
        %vm345 = vcmask 130048
        %v346 = vsel %vm345, %v307, 0.0
        %347 = vadd.xlane.f32.xlu0 %v346
        %v348 = vpop.xlane.xlu0 %347
        %v349 = vsel %vm345, %v312, 0.0
        %350 = vadd.xlane.f32.xlu0 %v349
        %v351 = vpop.xlane.xlu0 %350
        %v352 = vsel %vm345, %v317, 0.0
        %353 = vadd.xlane.f32.xlu0 %v352
        %v354 = vpop.xlane.xlu0 %353
        %v355 = vsel %vm345, %v322, 0.0
        %356 = vadd.xlane.f32.xlu0 %v355
        %v357 = vpop.xlane.xlu0 %356
        %v358 = vsel %vm345, %v327, 0.0
        %359 = vadd.xlane.f32.xlu0 %v358
        %v360 = vpop.xlane.xlu0 %359
        %v361 = vsel %vm345, %v332, 0.0
        %362 = vadd.xlane.f32.xlu0 %v361
        %v363 = vpop.xlane.xlu0 %362
        %v364 = vsel %vm345, %v337, 0.0
        %365 = vadd.xlane.f32.xlu0 %v364
        %v366 = vpop.xlane.xlu0 %365
        %v367 = vsel %vm345, %v342, 0.0
        %368 = vadd.xlane.f32.xlu0 %v367
        %v369 = vpop.xlane.xlu0 %368
        %v370 = vrcp.pop 16.0
        %v371 = vmul.f32 %v348, %v370
        %v372 = vmul.f32 %v351, %v370
        %v373 = vmul.f32 %v354, %v370
        %v374 = vmul.f32 %v357, %v370
        %v375 = vmul.f32 %v360, %v370
        %v376 = vmul.f32 %v363, %v370
        %v377 = vmul.f32 %v366, %v370
        %v378 = vmul.f32 %v369, %v370
        %387 = vrot.lane.b32.xlu0 %v307, 112
        %v388 = vpop.permute.xlu0 %387
        %389 = vrot.lane.b32.xlu0 %v312, 112
        %v390 = vpop.permute.xlu0 %389
        %391 = vrot.lane.b32.xlu0 %v317, 112
        %v392 = vpop.permute.xlu0 %391
        %393 = vrot.lane.b32.xlu0 %v322, 112
        %v394 = vpop.permute.xlu0 %393
        %395 = vrot.lane.b32.xlu0 %v327, 112
        %v396 = vpop.permute.xlu0 %395
        %397 = vrot.lane.b32.xlu0 %v332, 112
        %v398 = vpop.permute.xlu0 %397
        %399 = vrot.lane.b32.xlu0 %v337, 112
        %v400 = vpop.permute.xlu0 %399
        %401 = vrot.lane.b32.xlu0 %v342, 112
        %v402 = vpop.permute.xlu0 %401
        %v411 = vsel %vm345, %v388, 0.0
        %412 = vadd.xlane.f32.xlu0 %v411
        %v413 = vpop.xlane.xlu0 %412
        %v414 = vsel %vm345, %v390, 0.0
        %415 = vadd.xlane.f32.xlu0 %v414
        %v416 = vpop.xlane.xlu0 %415
        %v417 = vsel %vm345, %v392, 0.0
        %418 = vadd.xlane.f32.xlu0 %v417
        %v419 = vpop.xlane.xlu0 %418
        %v420 = vsel %vm345, %v394, 0.0
        %421 = vadd.xlane.f32.xlu0 %v420
        %v422 = vpop.xlane.xlu0 %421
        %v423 = vsel %vm345, %v396, 0.0
        %424 = vadd.xlane.f32.xlu0 %v423
        %v425 = vpop.xlane.xlu0 %424
        %v426 = vsel %vm345, %v398, 0.0
        %427 = vadd.xlane.f32.xlu0 %v426
        %v428 = vpop.xlane.xlu0 %427
        %v429 = vsel %vm345, %v400, 0.0
        %430 = vadd.xlane.f32.xlu0 %v429
        %v431 = vpop.xlane.xlu0 %430
        %v432 = vsel %vm345, %v402, 0.0
        %433 = vadd.xlane.f32.xlu0 %v432
        %v434 = vpop.xlane.xlu0 %433
        %v435 = vmul.f32 %v413, %v370
        %v436 = vmul.f32 %v416, %v370
        %v437 = vmul.f32 %v419, %v370
        %v438 = vmul.f32 %v422, %v370
        %v439 = vmul.f32 %v425, %v370
        %v440 = vmul.f32 %v428, %v370
        %v441 = vmul.f32 %v431, %v370
        %v442 = vmul.f32 %v434, %v370
        %vm443 = vcmp.ge.s32.totalorder %v210, 16
        %v444 = vsel %vm443, %v435, %v371
        %v445 = vsel %vm443, %v436, %v372
        %v446 = vsel %vm443, %v437, %v373
        %v447 = vsel %vm443, %v438, %v374
        %v448 = vsel %vm443, %v439, %v375
        %v449 = vsel %vm443, %v440, %v376
        %v450 = vsel %vm443, %v441, %v377
        %v451 = vsel %vm443, %v442, %v378
        %v452 = vsub.f32 %v307, %v444
        %v453 = vsub.f32 %v312, %v445
        %v454 = vsub.f32 %v317, %v446
        %v455 = vsub.f32 %v322, %v447
        %v456 = vsub.f32 %v327, %v448
        %v457 = vsub.f32 %v332, %v449
        %v458 = vsub.f32 %v337, %v450
        %v459 = vsub.f32 %v342, %v451
        %v460 = vmul.f32 %v452, %v452
        %v461 = vmul.f32 %v453, %v453
        %v462 = vmul.f32 %v454, %v454
        %v463 = vmul.f32 %v455, %v455
        %v464 = vmul.f32 %v456, %v456
        %v465 = vmul.f32 %v457, %v457
        %v466 = vmul.f32 %v458, %v458
        %v467 = vmul.f32 %v459, %v459
        %v468 = vsel %vm345, %v460, 0.0
        %469 = vadd.xlane.f32.xlu0 %v468
        %v470 = vpop.xlane.xlu0 %469
        %v471 = vsel %vm345, %v461, 0.0
        %472 = vadd.xlane.f32.xlu0 %v471
        %v473 = vpop.xlane.xlu0 %472
        %v474 = vsel %vm345, %v462, 0.0
        %475 = vadd.xlane.f32.xlu0 %v474
        %v476 = vpop.xlane.xlu0 %475
        %v477 = vsel %vm345, %v463, 0.0
        %478 = vadd.xlane.f32.xlu0 %v477
        %v479 = vpop.xlane.xlu0 %478
        %v480 = vsel %vm345, %v464, 0.0
        %481 = vadd.xlane.f32.xlu0 %v480
        %v482 = vpop.xlane.xlu0 %481
        %v483 = vsel %vm345, %v465, 0.0
        %484 = vadd.xlane.f32.xlu0 %v483
        %v485 = vpop.xlane.xlu0 %484
        %v486 = vsel %vm345, %v466, 0.0
        %487 = vadd.xlane.f32.xlu0 %v486
        %v488 = vpop.xlane.xlu0 %487
        %v489 = vsel %vm345, %v467, 0.0
        %490 = vadd.xlane.f32.xlu0 %v489
        %v491 = vpop.xlane.xlu0 %490
        %v492 = vmul.f32 %v470, %v370
        %v493 = vmul.f32 %v473, %v370
        %v494 = vmul.f32 %v476, %v370
        %v495 = vmul.f32 %v479, %v370
        %v496 = vmul.f32 %v482, %v370
        %v497 = vmul.f32 %v485, %v370
        %v498 = vmul.f32 %v488, %v370
        %v499 = vmul.f32 %v491, %v370
        %v500 = vadd.f32 %v492, 1e-05
        %v501 = vadd.f32 %v493, 1e-05
        %v502 = vadd.f32 %v494, 1e-05
        %v503 = vadd.f32 %v495, 1e-05
        %v504 = vadd.f32 %v496, 1e-05
        %v505 = vadd.f32 %v497, 1e-05
        %v506 = vadd.f32 %v498, 1e-05
        %v507 = vadd.f32 %v499, 1e-05
        %v508 = vrsqrt.pop %v500
        %v509 = vrsqrt.pop %v501
        %v510 = vrsqrt.pop %v502
        %v511 = vrsqrt.pop %v503
        %v512 = vrsqrt.pop %v504
        %v513 = vrsqrt.pop %v505
        %v514 = vrsqrt.pop %v506
        %v515 = vrsqrt.pop %v507
        %524 = vrot.lane.b32.xlu0 %v460, 112
        %v525 = vpop.permute.xlu0 %524
        %526 = vrot.lane.b32.xlu0 %v461, 112
        %v527 = vpop.permute.xlu0 %526
        %528 = vrot.lane.b32.xlu0 %v462, 112
        %v529 = vpop.permute.xlu0 %528
        %530 = vrot.lane.b32.xlu0 %v463, 112
        %v531 = vpop.permute.xlu0 %530
        %532 = vrot.lane.b32.xlu0 %v464, 112
        %v533 = vpop.permute.xlu0 %532
        %534 = vrot.lane.b32.xlu0 %v465, 112
        %v535 = vpop.permute.xlu0 %534
        %536 = vrot.lane.b32.xlu0 %v466, 112
        %v537 = vpop.permute.xlu0 %536
        %538 = vrot.lane.b32.xlu0 %v467, 112
        %v539 = vpop.permute.xlu0 %538
        %v548 = vsel %vm345, %v525, 0.0
        %549 = vadd.xlane.f32.xlu0 %v548
        %v550 = vpop.xlane.xlu0 %549
        %v551 = vsel %vm345, %v527, 0.0
        %552 = vadd.xlane.f32.xlu0 %v551
        %v553 = vpop.xlane.xlu0 %552
        %v554 = vsel %vm345, %v529, 0.0
        %555 = vadd.xlane.f32.xlu0 %v554
        %v556 = vpop.xlane.xlu0 %555
        %v557 = vsel %vm345, %v531, 0.0
        %558 = vadd.xlane.f32.xlu0 %v557
        %v559 = vpop.xlane.xlu0 %558
        %v560 = vsel %vm345, %v533, 0.0
        %561 = vadd.xlane.f32.xlu0 %v560
        %v562 = vpop.xlane.xlu0 %561
        %v563 = vsel %vm345, %v535, 0.0
        %564 = vadd.xlane.f32.xlu0 %v563
        %v565 = vpop.xlane.xlu0 %564
        %v566 = vsel %vm345, %v537, 0.0
        %567 = vadd.xlane.f32.xlu0 %v566
        %v568 = vpop.xlane.xlu0 %567
        %v569 = vsel %vm345, %v539, 0.0
        %570 = vadd.xlane.f32.xlu0 %v569
        %v571 = vpop.xlane.xlu0 %570
        %v572 = vmul.f32 %v550, %v370
        %v573 = vmul.f32 %v553, %v370
        %v574 = vmul.f32 %v556, %v370
        %v575 = vmul.f32 %v559, %v370
        %v576 = vmul.f32 %v562, %v370
        %v577 = vmul.f32 %v565, %v370
        %v578 = vmul.f32 %v568, %v370
        %v579 = vmul.f32 %v571, %v370
        %v580 = vadd.f32 %v572, 1e-05
        %v581 = vadd.f32 %v573, 1e-05
        %v582 = vadd.f32 %v574, 1e-05
        %v583 = vadd.f32 %v575, 1e-05
        %v584 = vadd.f32 %v576, 1e-05
        %v585 = vadd.f32 %v577, 1e-05
        %v586 = vadd.f32 %v578, 1e-05
        %v587 = vadd.f32 %v579, 1e-05
        %v588 = vrsqrt.pop %v580
        %v589 = vrsqrt.pop %v581
        %v590 = vrsqrt.pop %v582
        %v591 = vrsqrt.pop %v583
        %v592 = vrsqrt.pop %v584
        %v593 = vrsqrt.pop %v585
        %v594 = vrsqrt.pop %v586
        %v595 = vrsqrt.pop %v587
        %v596 = vsel %vm443, %v588, %v508
        %v597 = vsel %vm443, %v589, %v509
        %v598 = vsel %vm443, %v590, %v510
        %v599 = vsel %vm443, %v591, %v511
        %v600 = vsel %vm443, %v592, %v512
        %v601 = vsel %vm443, %v593, %v513
        %v602 = vsel %vm443, %v594, %v514
        %v603 = vsel %vm443, %v595, %v515
        %v604 = vmul.f32 %v452, %v596
        %v605 = vmul.f32 %v453, %v597
        %v606 = vmul.f32 %v454, %v598
        %v607 = vmul.f32 %v455, %v599
        %v608 = vmul.f32 %v456, %v600
        %v609 = vmul.f32 %v457, %v601
        %v610 = vmul.f32 %v458, %v602
        %v611 = vmul.f32 %v459, %v603
        %v613 = vlaneseq
        %v614 = vshrl.u32 %v613, 7
        %v615 = vsub.s32 0, %v614
        %v616 = vrot.slane %v207, %v615
        %v618 = vmul.f32 %v604, %v616
        %v619 = vmul.f32 %v605, %v616
        %v620 = vmul.f32 %v606, %v616
        %v621 = vmul.f32 %v607, %v616
        %v622 = vmul.f32 %v608, %v616
        %v623 = vmul.f32 %v609, %v616
        %v624 = vmul.f32 %v610, %v616
        %v625 = vmul.f32 %v611, %v616
        %v627 = vlaneseq
        %v628 = vshrl.u32 %v627, 7
        %v629 = vsub.s32 0, %v628
        %v630 = vrot.slane %v208, %v629
        %v632 = vadd.f32 %v618, %v630
        %v633 = vadd.f32 %v619, %v630
        %v634 = vadd.f32 %v620, %v630
        %v635 = vadd.f32 %v621, %v630
        %v636 = vadd.f32 %v622, %v630
        %v637 = vadd.f32 %v623, %v630
        %v638 = vadd.f32 %v624, %v630
        %v639 = vadd.f32 %v625, %v630
        %640 = vst.msk [vmem:[%s191] sm:$0xff] %vm215, %v632
        %641 = vst.msk [vmem:[%s191 + $0x10] sm:$0xff] %vm215, %v633
        %642 = vst.msk [vmem:[%s191 + $0x20] sm:$0xff] %vm215, %v634
        %643 = vst.msk [vmem:[%s191 + $0x30] sm:$0xff] %vm215, %v635
        %644 = vst.msk [vmem:[%s191 + $0x40] sm:$0xff] %vm215, %v636
        %645 = vst.msk [vmem:[%s191 + $0x50] sm:$0xff] %vm215, %v637
        %646 = vst.msk [vmem:[%s191 + $0x60] sm:$0xff] %vm215, %v638
        %647 = vst.msk [vmem:[%s191 + $0x70] sm:$0xff] %vm215, %v639
        %648 = vrot.lane.b32.xlu0 %v307, 96
        %v649 = vpop.permute.xlu0 %648
        %650 = vrot.lane.b32.xlu0 %v312, 96
        %v651 = vpop.permute.xlu0 %650
        %652 = vrot.lane.b32.xlu0 %v317, 96
        %v653 = vpop.permute.xlu0 %652
        %654 = vrot.lane.b32.xlu0 %v322, 96
        %v655 = vpop.permute.xlu0 %654
        %656 = vrot.lane.b32.xlu0 %v327, 96
        %v657 = vpop.permute.xlu0 %656
        %658 = vrot.lane.b32.xlu0 %v332, 96
        %v659 = vpop.permute.xlu0 %658
        %660 = vrot.lane.b32.xlu0 %v337, 96
        %v661 = vpop.permute.xlu0 %660
        %662 = vrot.lane.b32.xlu0 %v342, 96
        %v663 = vpop.permute.xlu0 %662
        %v672 = vsel %vm345, %v649, 0.0
        %673 = vadd.xlane.f32.xlu0 %v672
        %v674 = vpop.xlane.xlu0 %673
        %v675 = vsel %vm345, %v651, 0.0
        %676 = vadd.xlane.f32.xlu0 %v675
        %v677 = vpop.xlane.xlu0 %676
        %v678 = vsel %vm345, %v653, 0.0
        %679 = vadd.xlane.f32.xlu0 %v678
        %v680 = vpop.xlane.xlu0 %679
        %v681 = vsel %vm345, %v655, 0.0
        %682 = vadd.xlane.f32.xlu0 %v681
        %v683 = vpop.xlane.xlu0 %682
        %v684 = vsel %vm345, %v657, 0.0
        %685 = vadd.xlane.f32.xlu0 %v684
        %v686 = vpop.xlane.xlu0 %685
        %v687 = vsel %vm345, %v659, 0.0
        %688 = vadd.xlane.f32.xlu0 %v687
        %v689 = vpop.xlane.xlu0 %688
        %v690 = vsel %vm345, %v661, 0.0
        %691 = vadd.xlane.f32.xlu0 %v690
        %v692 = vpop.xlane.xlu0 %691
        %v693 = vsel %vm345, %v663, 0.0
        %694 = vadd.xlane.f32.xlu0 %v693
        %v695 = vpop.xlane.xlu0 %694
        %v696 = vmul.f32 %v674, %v370
        %v697 = vmul.f32 %v677, %v370
        %v698 = vmul.f32 %v680, %v370
        %v699 = vmul.f32 %v683, %v370
        %v700 = vmul.f32 %v686, %v370
        %v701 = vmul.f32 %v689, %v370
        %v702 = vmul.f32 %v692, %v370
        %v703 = vmul.f32 %v695, %v370
        %704 = vrot.lane.b32.xlu0 %v307, 80
        %v705 = vpop.permute.xlu0 %704
        %706 = vrot.lane.b32.xlu0 %v312, 80
        %v707 = vpop.permute.xlu0 %706
        %708 = vrot.lane.b32.xlu0 %v317, 80
        %v709 = vpop.permute.xlu0 %708
        %710 = vrot.lane.b32.xlu0 %v322, 80
        %v711 = vpop.permute.xlu0 %710
        %712 = vrot.lane.b32.xlu0 %v327, 80
        %v713 = vpop.permute.xlu0 %712
        %714 = vrot.lane.b32.xlu0 %v332, 80
        %v715 = vpop.permute.xlu0 %714
        %716 = vrot.lane.b32.xlu0 %v337, 80
        %v717 = vpop.permute.xlu0 %716
        %718 = vrot.lane.b32.xlu0 %v342, 80
        %v719 = vpop.permute.xlu0 %718
        %v728 = vsel %vm345, %v705, 0.0
        %729 = vadd.xlane.f32.xlu0 %v728
        %v730 = vpop.xlane.xlu0 %729
        %v731 = vsel %vm345, %v707, 0.0
        %732 = vadd.xlane.f32.xlu0 %v731
        %v733 = vpop.xlane.xlu0 %732
        %v734 = vsel %vm345, %v709, 0.0
        %735 = vadd.xlane.f32.xlu0 %v734
        %v736 = vpop.xlane.xlu0 %735
        %v737 = vsel %vm345, %v711, 0.0
        %738 = vadd.xlane.f32.xlu0 %v737
        %v739 = vpop.xlane.xlu0 %738
        %v740 = vsel %vm345, %v713, 0.0
        %741 = vadd.xlane.f32.xlu0 %v740
        %v742 = vpop.xlane.xlu0 %741
        %v743 = vsel %vm345, %v715, 0.0
        %744 = vadd.xlane.f32.xlu0 %v743
        %v745 = vpop.xlane.xlu0 %744
        %v746 = vsel %vm345, %v717, 0.0
        %747 = vadd.xlane.f32.xlu0 %v746
        %v748 = vpop.xlane.xlu0 %747
        %v749 = vsel %vm345, %v719, 0.0
        %750 = vadd.xlane.f32.xlu0 %v749
        %v751 = vpop.xlane.xlu0 %750
        %v752 = vmul.f32 %v730, %v370
        %v753 = vmul.f32 %v733, %v370
        %v754 = vmul.f32 %v736, %v370
        %v755 = vmul.f32 %v739, %v370
        %v756 = vmul.f32 %v742, %v370
        %v757 = vmul.f32 %v745, %v370
        %v758 = vmul.f32 %v748, %v370
        %v759 = vmul.f32 %v751, %v370
        %v760 = vsel %vm443, %v752, %v696
        %v761 = vsel %vm443, %v753, %v697
        %v762 = vsel %vm443, %v754, %v698
        %v763 = vsel %vm443, %v755, %v699
        %v764 = vsel %vm443, %v756, %v700
        %v765 = vsel %vm443, %v757, %v701
        %v766 = vsel %vm443, %v758, %v702
        %v767 = vsel %vm443, %v759, %v703
        %776 = vrot.lane.b32.xlu0 %v760, 32
        %v777 = vpop.permute.xlu0 %776
        %778 = vrot.lane.b32.xlu0 %v761, 32
        %v779 = vpop.permute.xlu0 %778
        %780 = vrot.lane.b32.xlu0 %v762, 32
        %v781 = vpop.permute.xlu0 %780
        %782 = vrot.lane.b32.xlu0 %v763, 32
        %v783 = vpop.permute.xlu0 %782
        %784 = vrot.lane.b32.xlu0 %v764, 32
        %v785 = vpop.permute.xlu0 %784
        %786 = vrot.lane.b32.xlu0 %v765, 32
        %v787 = vpop.permute.xlu0 %786
        %788 = vrot.lane.b32.xlu0 %v766, 32
        %v789 = vpop.permute.xlu0 %788
        %790 = vrot.lane.b32.xlu0 %v767, 32
        %v791 = vpop.permute.xlu0 %790
        %v800 = vsub.f32 %v307, %v777
        %v801 = vsub.f32 %v312, %v779
        %v802 = vsub.f32 %v317, %v781
        %v803 = vsub.f32 %v322, %v783
        %v804 = vsub.f32 %v327, %v785
        %v805 = vsub.f32 %v332, %v787
        %v806 = vsub.f32 %v337, %v789
        %v807 = vsub.f32 %v342, %v791
        %v808 = vmul.f32 %v800, %v800
        %v809 = vmul.f32 %v801, %v801
        %v810 = vmul.f32 %v802, %v802
        %v811 = vmul.f32 %v803, %v803
        %v812 = vmul.f32 %v804, %v804
        %v813 = vmul.f32 %v805, %v805
        %v814 = vmul.f32 %v806, %v806
        %v815 = vmul.f32 %v807, %v807
        %824 = vrot.lane.b32.xlu0 %v808, 96
        %v825 = vpop.permute.xlu0 %824
        %826 = vrot.lane.b32.xlu0 %v809, 96
        %v827 = vpop.permute.xlu0 %826
        %828 = vrot.lane.b32.xlu0 %v810, 96
        %v829 = vpop.permute.xlu0 %828
        %830 = vrot.lane.b32.xlu0 %v811, 96
        %v831 = vpop.permute.xlu0 %830
        %832 = vrot.lane.b32.xlu0 %v812, 96
        %v833 = vpop.permute.xlu0 %832
        %834 = vrot.lane.b32.xlu0 %v813, 96
        %v835 = vpop.permute.xlu0 %834
        %836 = vrot.lane.b32.xlu0 %v814, 96
        %v837 = vpop.permute.xlu0 %836
        %838 = vrot.lane.b32.xlu0 %v815, 96
        %v839 = vpop.permute.xlu0 %838
        %v848 = vsel %vm345, %v825, 0.0
        %849 = vadd.xlane.f32.xlu0 %v848
        %v850 = vpop.xlane.xlu0 %849
        %v851 = vsel %vm345, %v827, 0.0
        %852 = vadd.xlane.f32.xlu0 %v851
        %v853 = vpop.xlane.xlu0 %852
        %v854 = vsel %vm345, %v829, 0.0
        %855 = vadd.xlane.f32.xlu0 %v854
        %v856 = vpop.xlane.xlu0 %855
        %v857 = vsel %vm345, %v831, 0.0
        %858 = vadd.xlane.f32.xlu0 %v857
        %v859 = vpop.xlane.xlu0 %858
        %v860 = vsel %vm345, %v833, 0.0
        %861 = vadd.xlane.f32.xlu0 %v860
        %v862 = vpop.xlane.xlu0 %861
        %v863 = vsel %vm345, %v835, 0.0
        %864 = vadd.xlane.f32.xlu0 %v863
        %v865 = vpop.xlane.xlu0 %864
        %v866 = vsel %vm345, %v837, 0.0
        %867 = vadd.xlane.f32.xlu0 %v866
        %v868 = vpop.xlane.xlu0 %867
        %v869 = vsel %vm345, %v839, 0.0
        %870 = vadd.xlane.f32.xlu0 %v869
        %v871 = vpop.xlane.xlu0 %870
        %v872 = vmul.f32 %v850, %v370
        %v873 = vmul.f32 %v853, %v370
        %v874 = vmul.f32 %v856, %v370
        %v875 = vmul.f32 %v859, %v370
        %v876 = vmul.f32 %v862, %v370
        %v877 = vmul.f32 %v865, %v370
        %v878 = vmul.f32 %v868, %v370
        %v879 = vmul.f32 %v871, %v370
        %v880 = vadd.f32 %v872, 1e-05
        %v881 = vadd.f32 %v873, 1e-05
        %v882 = vadd.f32 %v874, 1e-05
        %v883 = vadd.f32 %v875, 1e-05
        %v884 = vadd.f32 %v876, 1e-05
        %v885 = vadd.f32 %v877, 1e-05
        %v886 = vadd.f32 %v878, 1e-05
        %v887 = vadd.f32 %v879, 1e-05
        %v888 = vrsqrt.pop %v880
        %v889 = vrsqrt.pop %v881
        %v890 = vrsqrt.pop %v882
        %v891 = vrsqrt.pop %v883
        %v892 = vrsqrt.pop %v884
        %v893 = vrsqrt.pop %v885
        %v894 = vrsqrt.pop %v886
        %v895 = vrsqrt.pop %v887
        %896 = vrot.lane.b32.xlu0 %v808, 80
        %v897 = vpop.permute.xlu0 %896
        %898 = vrot.lane.b32.xlu0 %v809, 80
        %v899 = vpop.permute.xlu0 %898
        %900 = vrot.lane.b32.xlu0 %v810, 80
        %v901 = vpop.permute.xlu0 %900
        %902 = vrot.lane.b32.xlu0 %v811, 80
        %v903 = vpop.permute.xlu0 %902
        %904 = vrot.lane.b32.xlu0 %v812, 80
        %v905 = vpop.permute.xlu0 %904
        %906 = vrot.lane.b32.xlu0 %v813, 80
        %v907 = vpop.permute.xlu0 %906
        %908 = vrot.lane.b32.xlu0 %v814, 80
        %v909 = vpop.permute.xlu0 %908
        %910 = vrot.lane.b32.xlu0 %v815, 80
        %v911 = vpop.permute.xlu0 %910
        %v920 = vsel %vm345, %v897, 0.0
        %921 = vadd.xlane.f32.xlu0 %v920
        %v922 = vpop.xlane.xlu0 %921
        %v923 = vsel %vm345, %v899, 0.0
        %924 = vadd.xlane.f32.xlu0 %v923
        %v925 = vpop.xlane.xlu0 %924
        %v926 = vsel %vm345, %v901, 0.0
        %927 = vadd.xlane.f32.xlu0 %v926
        %v928 = vpop.xlane.xlu0 %927
        %v929 = vsel %vm345, %v903, 0.0
        %930 = vadd.xlane.f32.xlu0 %v929
        %v931 = vpop.xlane.xlu0 %930
        %v932 = vsel %vm345, %v905, 0.0
        %933 = vadd.xlane.f32.xlu0 %v932
        %v934 = vpop.xlane.xlu0 %933
        %v935 = vsel %vm345, %v907, 0.0
        %936 = vadd.xlane.f32.xlu0 %v935
        %v937 = vpop.xlane.xlu0 %936
        %v938 = vsel %vm345, %v909, 0.0
        %939 = vadd.xlane.f32.xlu0 %v938
        %v940 = vpop.xlane.xlu0 %939
        %v941 = vsel %vm345, %v911, 0.0
        %942 = vadd.xlane.f32.xlu0 %v941
        %v943 = vpop.xlane.xlu0 %942
        %v944 = vmul.f32 %v922, %v370
        %v945 = vmul.f32 %v925, %v370
        %v946 = vmul.f32 %v928, %v370
        %v947 = vmul.f32 %v931, %v370
        %v948 = vmul.f32 %v934, %v370
        %v949 = vmul.f32 %v937, %v370
        %v950 = vmul.f32 %v940, %v370
        %v951 = vmul.f32 %v943, %v370
        %v952 = vadd.f32 %v944, 1e-05
        %v953 = vadd.f32 %v945, 1e-05
        %v954 = vadd.f32 %v946, 1e-05
        %v955 = vadd.f32 %v947, 1e-05
        %v956 = vadd.f32 %v948, 1e-05
        %v957 = vadd.f32 %v949, 1e-05
        %v958 = vadd.f32 %v950, 1e-05
        %v959 = vadd.f32 %v951, 1e-05
        %v960 = vrsqrt.pop %v952
        %v961 = vrsqrt.pop %v953
        %v962 = vrsqrt.pop %v954
        %v963 = vrsqrt.pop %v955
        %v964 = vrsqrt.pop %v956
        %v965 = vrsqrt.pop %v957
        %v966 = vrsqrt.pop %v958
        %v967 = vrsqrt.pop %v959
        %v968 = vsel %vm443, %v960, %v888
        %v969 = vsel %vm443, %v961, %v889
        %v970 = vsel %vm443, %v962, %v890
        %v971 = vsel %vm443, %v963, %v891
        %v972 = vsel %vm443, %v964, %v892
        %v973 = vsel %vm443, %v965, %v893
        %v974 = vsel %vm443, %v966, %v894
        %v975 = vsel %vm443, %v967, %v895
        %984 = vrot.lane.b32.xlu0 %v968, 32
        %v985 = vpop.permute.xlu0 %984
        %986 = vrot.lane.b32.xlu0 %v969, 32
        %v987 = vpop.permute.xlu0 %986
        %988 = vrot.lane.b32.xlu0 %v970, 32
        %v989 = vpop.permute.xlu0 %988
        %990 = vrot.lane.b32.xlu0 %v971, 32
        %v991 = vpop.permute.xlu0 %990
        %992 = vrot.lane.b32.xlu0 %v972, 32
        %v993 = vpop.permute.xlu0 %992
        %994 = vrot.lane.b32.xlu0 %v973, 32
        %v995 = vpop.permute.xlu0 %994
        %996 = vrot.lane.b32.xlu0 %v974, 32
        %v997 = vpop.permute.xlu0 %996
        %998 = vrot.lane.b32.xlu0 %v975, 32
        %v999 = vpop.permute.xlu0 %998
        %v1008 = vmul.f32 %v800, %v985
        %v1009 = vmul.f32 %v801, %v987
        %v1010 = vmul.f32 %v802, %v989
        %v1011 = vmul.f32 %v803, %v991
        %v1012 = vmul.f32 %v804, %v993
        %v1013 = vmul.f32 %v805, %v995
        %v1014 = vmul.f32 %v806, %v997
        %v1015 = vmul.f32 %v807, %v999
        %1016 = vrot.lane.b32.xlu0 %v616, 32
        %v1017 = vpop.permute.xlu0 %1016
        %v1019 = vmul.f32 %v1008, %v1017
        %v1020 = vmul.f32 %v1009, %v1017
        %v1021 = vmul.f32 %v1010, %v1017
        %v1022 = vmul.f32 %v1011, %v1017
        %v1023 = vmul.f32 %v1012, %v1017
        %v1024 = vmul.f32 %v1013, %v1017
        %v1025 = vmul.f32 %v1014, %v1017
        %v1026 = vmul.f32 %v1015, %v1017
        %1027 = vrot.lane.b32.xlu0 %v630, 32
        %v1028 = vpop.permute.xlu0 %1027
        %v1030 = vadd.f32 %v1019, %v1028
        %v1031 = vadd.f32 %v1020, %v1028
        %v1032 = vadd.f32 %v1021, %v1028
        %v1033 = vadd.f32 %v1022, %v1028
        %v1034 = vadd.f32 %v1023, %v1028
        %v1035 = vadd.f32 %v1024, %v1028
        %v1036 = vadd.f32 %v1025, %v1028
        %v1037 = vadd.f32 %v1026, %v1028
        %1046 = vrot.lane.b32.xlu0 %v1030, 96
        %v1047 = vpop.permute.xlu0 %1046
        %1048 = vrot.lane.b32.xlu0 %v1031, 96
        %v1049 = vpop.permute.xlu0 %1048
        %1050 = vrot.lane.b32.xlu0 %v1032, 96
        %v1051 = vpop.permute.xlu0 %1050
        %1052 = vrot.lane.b32.xlu0 %v1033, 96
        %v1053 = vpop.permute.xlu0 %1052
        %1054 = vrot.lane.b32.xlu0 %v1034, 96
        %v1055 = vpop.permute.xlu0 %1054
        %1056 = vrot.lane.b32.xlu0 %v1035, 96
        %v1057 = vpop.permute.xlu0 %1056
        %1058 = vrot.lane.b32.xlu0 %v1036, 96
        %v1059 = vpop.permute.xlu0 %1058
        %1060 = vrot.lane.b32.xlu0 %v1037, 96
        %v1061 = vpop.permute.xlu0 %1060
        %s1070 = scalar_lea.vmem %s191, 8 [#allocation2]
        %1071 = vst.msk [vmem:[%s1070] sm:$0xff] %vm215, %v1047
        %1072 = vst.msk [vmem:[%s1070 + $0x10] sm:$0xff] %vm215, %v1049
        %1073 = vst.msk [vmem:[%s1070 + $0x20] sm:$0xff] %vm215, %v1051
        %1074 = vst.msk [vmem:[%s1070 + $0x30] sm:$0xff] %vm215, %v1053
        %1075 = vst.msk [vmem:[%s1070 + $0x40] sm:$0xff] %vm215, %v1055
        %1076 = vst.msk [vmem:[%s1070 + $0x50] sm:$0xff] %vm215, %v1057
        %1077 = vst.msk [vmem:[%s1070 + $0x60] sm:$0xff] %vm215, %v1059
        %1078 = vst.msk [vmem:[%s1070 + $0x70] sm:$0xff] %vm215, %v1061
        %s1079 = sand.u32 %s115, 1
        %s1080 = scalar_lea.sflag [#allocation3], %s1079
        %s1081 = sand.u32 %s115, 1
        %s1082 = smul.addr %s1081, 128
        %s1083 = scalar_lea.vmem [#allocation2], %s1082
        // Predicated region
        $region37: #{tpu_custom_call.1} parent=35 // pred_check
          %p1084 = pneg %p125
        $region38: #{tpu_custom_call.1} parent=35 // pred_check_branch
          %1086 = sbr.rel (%p1084) target = $region40
        $region39: #{tpu_custom_call.1} parent=35 // pred_region
          %s1087 = smul.u32 8, %s18
          %s1089 = ssub.s32 2048, 2048
          %1090 = vsyncadd %s1080, %s1089
          %s1091 = smul.addr %s1087, 2
          %s1092 = smul.addr %s1091, 128
          %s1093 = scalar_lea.hbm %s4, %s1092
          %s1094 = sshll.u32 %s1083, 4
          %s1095 = int_to_ptr.vmem [resolvable:$true] %s1094
          %1100 = dma.vmem_to_hbm [thread:$0]  %s1095, 2048, %s1093, %s1080, 128, 128, 8
        $region40: #{tpu_custom_call.1} parent=35 // pred_fallthru
          _
      $region36: #{tpu_custom_call.1} parent=5 // pred_fallthru
        _
      %p1101 = scmp.le.s32.totalorder 2, %s13
      // Predicated region
      $region41: #{tpu_custom_call.1} parent=5 // pred_check
        %p1102 = pneg %p1101
      $region42: #{tpu_custom_call.1} parent=5 // pred_check_branch
        %1104 = sbr.rel (%p1102) target = $region44
      $region43: #{tpu_custom_call.1} parent=5 // pred_region
        %s1105 = ssub.s32 %s13, 2
        // Predicated region
        $region45: #{tpu_custom_call.1} parent=43 // pred_check
          %p1106 = pneg %p131
        $region46: #{tpu_custom_call.1} parent=43 // pred_check_branch
          %1108 = sbr.rel (%p1106) target = $region48
        $region47: #{tpu_custom_call.1} parent=43 // pred_region
          %s1109 = sand.u32 %s116, 1
          %s1110 = scalar_lea.sflag [#allocation3], %s1109
          %s1111 = sand.u32 %s116, 1
          %s1112 = smul.addr %s1111, 128
          %s1113 = scalar_lea.vmem [#allocation2], %s1112
          %1114 = dma.done %s1110, 2048
        $region48: #{tpu_custom_call.1} parent=43 // pred_fallthru
          _
      $region44: #{tpu_custom_call.1} parent=5 // pred_fallthru
        _
    $region6: #{tpu_custom_call.1} parent=1 // loop_footer
      %s17 = sadd.s32 1, %s13
    $region7: #{tpu_custom_call.1} parent=1 // loop_footer_branch
      %12 = sbr.rel target = $region3
    $region8: #{tpu_custom_call.1} parent=1 // loop_exit
      _
    %1115 = vsyncpa [#allocation3], 1
    %s1116 = scalar_lea.sflag [#allocation3], 1
    %1117 = vsyncpa %s1116, 1

// kernel: tpu_custom_call.1
$region0: #{tpu_custom_call.1}
  #allocation0 [shape = 'u32[]', space=smem, size = 0x4, offset = 0x4, fixed_abs, tag = 'smem constant byte address 0x4 - core index']
  #allocation1 [shape = 'u32[144,128]{1,0:T(1,128)}', space=vmem, size = 0x12000, scoped, tag = 'internal scratch']
  %s0 = inlined_call_operand.vmem [shape: f32[128,32], index: 0, kind: input, shape index: {}]
  %s1 = inlined_call_operand.vmem [shape: f32[32,64], index: 1, kind: input, shape index: {}]
  %s2 = inlined_call_operand.vmem [shape: f32[1,32], index: 2, kind: input, shape index: {}]
  %s3 = inlined_call_operand.vmem [shape: f32[1,32], index: 3, kind: input, shape index: {}]
  %s4 = inlined_call_operand.hbm [shape: f32[16,2,8,32], index: 4, kind: output, shape index: {}]
  %s5 = sld [smem:[#allocation0]]
  $region49: #{tpu_custom_call.1} parent=0
    _
  %s7 = ssub.s32 1, %s5
  %s8 = scalar_select 0, %s7, %s5
  $region1: #{tpu_custom_call.1} parent=0
    #allocation2 [shape = 'u8[131072]{0}', space=vmem, size = 0x20000, scoped, tag = 'output window, operand 0']
    #allocation3 [shape = 's32[2]{0}', space=sflag, size = 0x8, scoped, tag = 'scoped memory for tpu_custom_call.1']
    %9 = vsyncpa [#allocation3], 0
    %s10 = scalar_lea.sflag [#allocation3], 1
    %11 = vsyncpa %s10, 0
    loop: start=0, step=1, limit=4
    $region2: #{tpu_custom_call.1} parent=1 // loop_pre_header
      _
    $region3: #{tpu_custom_call.1} parent=1 // loop_header
      %s13 = sphi 0, %s17
      %p14 = scmp.ge.s32.totalorder %s13, 4
      %s23 = sphi 0, %s25
      %s26 = sphi 0, %s23
      %s27 = sphi 0, %s26
      %s43 = sphi 0, %s27
      %s47 = sphi 0, %s47
      %s49 = sphi 0, %s47
      %s50 = sphi 0, %s49
      %s64 = sphi 0, %s50
      %s68 = sphi 0, %s68
      %s70 = sphi 0, %s68
      %s71 = sphi 0, %s70
      %s85 = sphi 0, %s71
      %s89 = sphi 0, %s89
      %s91 = sphi 0, %s89
      %s92 = sphi 0, %s91
      %s106 = sphi 0, %s92
      %s112 = sphi 0, %s114
      %s115 = sphi 0, %s112
      %s116 = sphi 0, %s115
      %s132 = sphi 0, %s116
    $region4: #{tpu_custom_call.1} parent=1 // loop_header_branch
      %16 = sbr.rel (%p14) target = $region8
    $region5: #{tpu_custom_call.1} parent=1 // loop_body
      %s18 = ssub.s32 %s13, 1
      %s19 = ssub.s32 %s13, 2
      %s20 = sadd.s32 %s13, 1
      %s21 = ssub.s32 %s13, %s20
      %p22 = scmp.eq.s32.totalorder %s21, 0
      %s24 = sadd.s32 %s23, 1
      %s25 = scalar_select %p22, %s23, %s24
      %p28 = pneg %p22
      %p29 = scmp.eq.s32.totalorder %s13, 1
      %p30 = por %p28, %p29
      %p31 = scmp.ne.s32.totalorder %s23, %s26
      %p32 = scmp.eq.s32.totalorder %s13, 0
      %p33 = por %p31, %p32
      %p34 = scmp.ne.s32.totalorder %s23, %s26
      %p35 = scmp.eq.s32.totalorder %s18, 1
      %p36 = por %p34, %p35
      %p37 = scmp.ne.s32.totalorder %s26, %s27
      %p38 = scmp.eq.s32.totalorder %s18, 0
      %p39 = por %p37, %p38
      %p40 = scmp.ne.s32.totalorder %s26, %s27
      %p41 = scmp.eq.s32.totalorder %s19, 1
      %p42 = por %p40, %p41
      %p44 = scmp.ne.s32.totalorder %s27, %s43
      %p45 = scmp.eq.s32.totalorder %s19, 0
      %p46 = por %p44, %p45
      %s48 = sadd.s32 %s47, 1
      %p51 = scmp.eq.s32.totalorder %s13, 1
      %p52 = scmp.ne.s32.totalorder %s47, %s49
      %p53 = scmp.eq.s32.totalorder %s13, 0
      %p54 = por %p52, %p53
      %p55 = scmp.ne.s32.totalorder %s47, %s49
      %p56 = scmp.eq.s32.totalorder %s18, 1
      %p57 = por %p55, %p56
      %p58 = scmp.ne.s32.totalorder %s49, %s50
      %p59 = scmp.eq.s32.totalorder %s18, 0
      %p60 = por %p58, %p59
      %p61 = scmp.ne.s32.totalorder %s49, %s50
      %p62 = scmp.eq.s32.totalorder %s19, 1
      %p63 = por %p61, %p62
      %p65 = scmp.ne.s32.totalorder %s50, %s64
      %p66 = scmp.eq.s32.totalorder %s19, 0
      %p67 = por %p65, %p66
      %s69 = sadd.s32 %s68, 1
      %p72 = scmp.eq.s32.totalorder %s13, 1
      %p73 = scmp.ne.s32.totalorder %s68, %s70
      %p74 = scmp.eq.s32.totalorder %s13, 0
      %p75 = por %p73, %p74
      %p76 = scmp.ne.s32.totalorder %s68, %s70
      %p77 = scmp.eq.s32.totalorder %s18, 1
      %p78 = por %p76, %p77
      %p79 = scmp.ne.s32.totalorder %s70, %s71
      %p80 = scmp.eq.s32.totalorder %s18, 0
      %p81 = por %p79, %p80
      %p82 = scmp.ne.s32.totalorder %s70, %s71
      %p83 = scmp.eq.s32.totalorder %s19, 1
      %p84 = por %p82, %p83
      %p86 = scmp.ne.s32.totalorder %s71, %s85
      %p87 = scmp.eq.s32.totalorder %s19, 0
      %p88 = por %p86, %p87
      %s90 = sadd.s32 %s89, 1
      %p93 = scmp.eq.s32.totalorder %s13, 1
      %p94 = scmp.ne.s32.totalorder %s89, %s91
      %p95 = scmp.eq.s32.totalorder %s13, 0
      %p96 = por %p94, %p95
      %p97 = scmp.ne.s32.totalorder %s89, %s91
      %p98 = scmp.eq.s32.totalorder %s18, 1
      %p99 = por %p97, %p98
      %p100 = scmp.ne.s32.totalorder %s91, %s92
      %p101 = scmp.eq.s32.totalorder %s18, 0
      %p102 = por %p100, %p101
      %p103 = scmp.ne.s32.totalorder %s91, %s92
      %p104 = scmp.eq.s32.totalorder %s19, 1
      %p105 = por %p103, %p104
      %p107 = scmp.ne.s32.totalorder %s92, %s106
      %p108 = scmp.eq.s32.totalorder %s19, 0
      %p109 = por %p107, %p108
      %s110 = ssub.s32 %s13, %s20
      %p111 = scmp.eq.s32.totalorder %s110, 0
      %s113 = sadd.s32 %s112, 1
      %s114 = scalar_select %p111, %s112, %s113
      %p117 = pneg %p111
      %p118 = scmp.eq.s32.totalorder %s13, 1
      %p119 = por %p117, %p118
      %p120 = scmp.ne.s32.totalorder %s112, %s115
      %p121 = scmp.eq.s32.totalorder %s13, 0
      %p122 = por %p120, %p121
      %p123 = scmp.ne.s32.totalorder %s112, %s115
      %p124 = scmp.eq.s32.totalorder %s18, 1
      %p125 = por %p123, %p124
      %p126 = scmp.ne.s32.totalorder %s115, %s116
      %p127 = scmp.eq.s32.totalorder %s18, 0
      %p128 = por %p126, %p127
      %p129 = scmp.ne.s32.totalorder %s115, %s116
      %p130 = scmp.eq.s32.totalorder %s19, 1
      %p131 = por %p129, %p130
      %p133 = scmp.ne.s32.totalorder %s116, %s132
      %p134 = scmp.eq.s32.totalorder %s19, 0
      %p135 = por %p133, %p134
      %p136 = scmp.le.s32.totalorder 1, %s13
      %p137 = scmp.lt.s32.totalorder %s13, 3
      %p138 = pnand %p136, %p137
      %p139 = pneg %p138
      // Predicated region
      $region9: #{tpu_custom_call.1} parent=5 // pred_check
        _
      $region10: #{tpu_custom_call.1} parent=5 // pred_check_branch
        %141 = sbr.rel (%p138) target = $region12
      $region11: #{tpu_custom_call.1} parent=5 // pred_region
        %s142 = ssub.s32 %s13, 1
        // Predicated region
        $region13: #{tpu_custom_call.1} parent=11 // pred_check
          %p143 = pneg %p60
        $region14: #{tpu_custom_call.1} parent=11 // pred_check_branch
          %145 = sbr.rel (%p143) target = $region16
        $region15: #{tpu_custom_call.1} parent=11 // pred_region
          _
        $region16: #{tpu_custom_call.1} parent=11 // pred_fallthru
          _
        // Predicated region
        $region17: #{tpu_custom_call.1} parent=11 // pred_check
          %p146 = pneg %p81
        $region18: #{tpu_custom_call.1} parent=11 // pred_check_branch
          %148 = sbr.rel (%p146) target = $region20
        $region19: #{tpu_custom_call.1} parent=11 // pred_region
          _
        $region20: #{tpu_custom_call.1} parent=11 // pred_fallthru
          _
        // Predicated region
        $region21: #{tpu_custom_call.1} parent=11 // pred_check
          %p149 = pneg %p102
        $region22: #{tpu_custom_call.1} parent=11 // pred_check_branch
          %151 = sbr.rel (%p149) target = $region24
        $region23: #{tpu_custom_call.1} parent=11 // pred_region
          _
        $region24: #{tpu_custom_call.1} parent=11 // pred_fallthru
          _
      $region12: #{tpu_custom_call.1} parent=5 // pred_fallthru
        _
      %p152 = scmp.lt.s32.totalorder %s13, 2
      // Predicated region
      $region25: #{tpu_custom_call.1} parent=5 // pred_check
        %p153 = pneg %p152
      $region26: #{tpu_custom_call.1} parent=5 // pred_check_branch
        %155 = sbr.rel (%p153) target = $region28
      $region27: #{tpu_custom_call.1} parent=5 // pred_region
        // Predicated region
        $region29: #{tpu_custom_call.1} parent=27 // pred_check
          %p156 = pneg %p33
        $region30: #{tpu_custom_call.1} parent=27 // pred_check_branch
          %158 = sbr.rel (%p156) target = $region32
        $region31: #{tpu_custom_call.1} parent=27 // pred_region
          %s159 = smul.u32 8, %s13
          %p160 = scmp.lt.s32.totalorder %s159, 15
          %s161 = scalar_select %p160, %s159, 15
          %s162 = smul.addr %s161, 8
          %s163 = scalar_lea.vmem %s0, %s162
          %s164 = smul.u32 8, %s13
        $region32: #{tpu_custom_call.1} parent=27 // pred_fallthru
          _
      $region28: #{tpu_custom_call.1} parent=5 // pred_fallthru
        _
      %p165 = scmp.le.s32.totalorder 1, %s13
      %p166 = scmp.lt.s32.totalorder %s13, 3
      %p167 = pnand %p165, %p166
      %p168 = pneg %p167
      // Predicated region
      $region33: #{tpu_custom_call.1} parent=5 // pred_check
        _
      $region34: #{tpu_custom_call.1} parent=5 // pred_check_branch
        %170 = sbr.rel (%p167) target = $region36
      $region35: #{tpu_custom_call.1} parent=5 // pred_region
        %s171 = ssub.s32 %s13, 1
        %s172 = smul.u32 8, %s18
        %p173 = scmp.lt.s32.totalorder %s172, 15
        %s174 = scalar_select %p173, %s172, 15
        %s175 = smul.addr %s174, 8
        %s176 = scalar_lea.vmem %s0, %s175
        %p177 = pneg %p39
        %p178 = pneg %p36
        %p179 = pneg %p60
        %p180 = pneg %p57
        %p181 = pneg %p81
        %p182 = pneg %p78
        %p183 = pneg %p102
        %p184 = pneg %p99
        %p185 = pneg %p128
        %p186 = pneg %p125
        %s187 = sand.u32 %s115, 1
        %s188 = scalar_lea.sflag [#allocation3], %s187
        %s189 = sand.u32 %s115, 1
        %s190 = smul.addr %s189, 128
        %s191 = scalar_lea.vmem [#allocation2], %s190
        %s192 = smul.u32 8, %s18
        %p193 = scmp.lt.s32.totalorder %s192, 15
        %s194 = scalar_select %p193, %s192, 15
        %s195 = smul.addr %s194, 8
        %s196 = scalar_lea.vmem %s0, %s195
        %s197 = smul.u32 8, %s18
        %s198 = smul.u32 8, %s18
        %v199 = vld [vmem:[%s196] sm:$0xff]
        %v200 = vld [vmem:[%s196 + $0x8] sm:$0xff]
        %v201 = vld [vmem:[%s196 + $0x10] sm:$0xff]
        %v202 = vld [vmem:[%s196 + $0x18] sm:$0xff]
        %v203 = vld [vmem:[%s196 + $0x20] sm:$0xff]
        %v204 = vld [vmem:[%s196 + $0x28] sm:$0xff]
        %v205 = vld [vmem:[%s196 + $0x30] sm:$0xff]
        %v206 = vld [vmem:[%s196 + $0x38] sm:$0xff]
        %v207 = vld [vmem:[%s2] sm:$0x1]
        %v208 = vld [vmem:[%s3] sm:$0x1]
        %v209 = vlaneseq
        %v210 = vand.u32 %v209, 127
        %v211 = vld [vmem:[%s1] sm:$0xff]
        %v212 = vld [vmem:[%s1 + $0x8] sm:$0xff]
        %v213 = vld [vmem:[%s1 + $0x10] sm:$0xff]
        %v214 = vld [vmem:[%s1 + $0x18] sm:$0xff]
        %vm215 = vcmask 261120
        %v217 = vsel %vm215, %v199, 0
        %v220 = vsel %vm215, %v200, 0
        %v223 = vsel %vm215, %v201, 0
        %v226 = vsel %vm215, %v202, 0
        %v229 = vsel %vm215, %v203, 0
        %v232 = vsel %vm215, %v204, 0
        %v235 = vsel %vm215, %v205, 0
        %v238 = vsel %vm215, %v206, 0
        %240 = vmatprep.subr.mxu0 0.0
        %241 = vmatpush1.msra.mxu0 %v211
        %242 = vmatprep.subr.mxu0 0.0
        %243 = vmatpush1.msra.mxu0 %v212
        %244 = vmatprep.subr.mxu0 0.0
        %245 = vmatpush1.msra.mxu0 %v213
        %246 = vmatprep.subr.mxu0 0.0
        %247 = vmatpush1.msra.mxu0 %v214
        %248 = vmatprep.subr.mxu0 0.0
        %249 = vmatpush1.msra.mxu0 0.0
        %250 = vmatprep.subr.mxu0 0.0
        %251 = vmatpush1.msra.mxu0 0.0
        %252 = vmatprep.subr.mxu0 0.0
        %253 = vmatpush1.msra.mxu0 0.0
        %254 = vmatprep.subr.mxu0 0.0
        %255 = vmatpush1.msra.mxu0 0.0
        %256 = vmatprep.subr.mxu0 0.0
        %257 = vmatpush1.msra.mxu0 0.0
        %258 = vmatprep.subr.mxu0 0.0
        %259 = vmatpush1.msra.mxu0 0.0
        %260 = vmatprep.subr.mxu0 0.0
        %261 = vmatpush1.msra.mxu0 0.0
        %262 = vmatprep.subr.mxu0 0.0
        %263 = vmatpush1.msra.mxu0 0.0
        %264 = vmatprep.subr.mxu0 0.0
        %265 = vmatpush1.msra.mxu0 0.0
        %266 = vmatprep.subr.mxu0 0.0
        %267 = vmatpush1.msra.mxu0 0.0
        %268 = vmatprep.subr.mxu0 0.0
        %269 = vmatpush1.msra.mxu0 0.0
        %270 = vmatprep.subr.mxu0 0.0
        %271 = vmatpush1.msra.mxu0 0.0
        %272 = vmatprep.subr.mxu0 0.0
        %273 = vmatpush1.msra.mxu0 0.0
        %274 = vmatprep.subr.mxu0 0.0
        %275 = vmatpush1.msra.mxu0 0.0
        %276 = vmatprep.subr.mxu0 0.0
        %277 = vmatpush1.msra.mxu0 0.0
        %278 = vmatprep.subr.mxu0 0.0
        %279 = vmatpush1.msra.mxu0 0.0
        %280 = vmatprep.subr.mxu0 0.0
        %281 = vmatpush1.msra.mxu0 0.0
        %282 = vmatprep.subr.mxu0 0.0
        %283 = vmatpush1.msra.mxu0 0.0
        %284 = vmatprep.subr.mxu0 0.0
        %285 = vmatpush1.msra.mxu0 0.0
        %286 = vmatprep.subr.mxu0 0.0
        %287 = vmatpush1.msra.mxu0 0.0
        %288 = vmatprep.subr.mxu0 0.0
        %289 = vmatpush1.msra.mxu0 0.0
        %290 = vmatprep.subr.mxu0 0.0
        %291 = vmatpush1.msra.mxu0 0.0
        %292 = vmatprep.subr.mxu0 0.0
        %293 = vmatpush1.msra.mxu0 0.0
        %294 = vmatprep.subr.mxu0 0.0
        %295 = vmatpush1.msra.mxu0 0.0
        %296 = vmatprep.subr.mxu0 0.0
        %297 = vmatpush1.msra.mxu0 0.0
        %298 = vmatprep.subr.mxu0 0.0
        %299 = vmatpush1.msra.mxu0 0.0
        %300 = vmatprep.subr.mxu0 0.0
        %301 = vmatpush1.msra.mxu0 0.0
        %302 = vmatprep.subr.mxu0 0.0
        %303 = vmatpush1.msra.mxu0 0.0
        %304 = vmatprep.mubr.f32.mxu0 0.0
        %305 = vmatmul.mubr.f32.gmra.mrb[0].mxu0 %v217
        %v306 = vpop.f32.mrb[0].mxu0
        %v307 = vadd.f32 0.0, %v306
        %v308 = vpop.f32.mrb[0].mxu0
        %309 = vmatprep.mubr.f32.mxu0 0.0
        %310 = vmatmul.mubr.f32.gmra.mrb[0].mxu0 %v220
        %v311 = vpop.f32.mrb[0].mxu0
        %v312 = vadd.f32 0.0, %v311
        %v313 = vpop.f32.mrb[0].mxu0
        %314 = vmatprep.mubr.f32.mxu0 0.0
        %315 = vmatmul.mubr.f32.gmra.mrb[0].mxu0 %v223
        %v316 = vpop.f32.mrb[0].mxu0
        %v317 = vadd.f32 0.0, %v316
        %v318 = vpop.f32.mrb[0].mxu0
        %319 = vmatprep.mubr.f32.mxu0 0.0
        %320 = vmatmul.mubr.f32.gmra.mrb[0].mxu0 %v226
        %v321 = vpop.f32.mrb[0].mxu0
        %v322 = vadd.f32 0.0, %v321
        %v323 = vpop.f32.mrb[0].mxu0
        %324 = vmatprep.mubr.f32.mxu0 0.0
        %325 = vmatmul.mubr.f32.gmra.mrb[0].mxu0 %v229
        %v326 = vpop.f32.mrb[0].mxu0
        %v327 = vadd.f32 0.0, %v326
        %v328 = vpop.f32.mrb[0].mxu0
        %329 = vmatprep.mubr.f32.mxu0 0.0
        %330 = vmatmul.mubr.f32.gmra.mrb[0].mxu0 %v232
        %v331 = vpop.f32.mrb[0].mxu0
        %v332 = vadd.f32 0.0, %v331
        %v333 = vpop.f32.mrb[0].mxu0
        %334 = vmatprep.mubr.f32.mxu0 0.0
        %335 = vmatmul.mubr.f32.gmra.mrb[0].mxu0 %v235
        %v336 = vpop.f32.mrb[0].mxu0
        %v337 = vadd.f32 0.0, %v336
        %v338 = vpop.f32.mrb[0].mxu0
        %339 = vmatprep.mubr.f32.mxu0 0.0
        %340 = vmatmul.mubr.f32.gmra.mrb[0].mxu0 %v238
        %v341 = vpop.f32.mrb[0].mxu0
        %v342 = vadd.f32 0.0, %v341
        %v343 = vpop.f32.mrb[0].mxu0
        %344 = vdwg.mxu0
        %vm345 = vcmask 130048
        %v346 = vsel %vm345, %v307, 0.0
        %347 = vadd.xlane.f32.xlu0 %v346
        %v348 = vpop.xlane.xlu0 %347
        %v349 = vsel %vm345, %v312, 0.0
        %350 = vadd.xlane.f32.xlu0 %v349
        %v351 = vpop.xlane.xlu0 %350
        %v352 = vsel %vm345, %v317, 0.0
        %353 = vadd.xlane.f32.xlu0 %v352
        %v354 = vpop.xlane.xlu0 %353
        %v355 = vsel %vm345, %v322, 0.0
        %356 = vadd.xlane.f32.xlu0 %v355
        %v357 = vpop.xlane.xlu0 %356
        %v358 = vsel %vm345, %v327, 0.0
        %359 = vadd.xlane.f32.xlu0 %v358
        %v360 = vpop.xlane.xlu0 %359
        %v361 = vsel %vm345, %v332, 0.0
        %362 = vadd.xlane.f32.xlu0 %v361
        %v363 = vpop.xlane.xlu0 %362
        %v364 = vsel %vm345, %v337, 0.0
        %365 = vadd.xlane.f32.xlu0 %v364
        %v366 = vpop.xlane.xlu0 %365
        %v367 = vsel %vm345, %v342, 0.0
        %368 = vadd.xlane.f32.xlu0 %v367
        %v369 = vpop.xlane.xlu0 %368
        %v370 = vrcp.pop 16.0
        %v371 = vmul.f32 %v348, %v370
        %v372 = vmul.f32 %v351, %v370
        %v373 = vmul.f32 %v354, %v370
        %v374 = vmul.f32 %v357, %v370
        %v375 = vmul.f32 %v360, %v370
        %v376 = vmul.f32 %v363, %v370
        %v377 = vmul.f32 %v366, %v370
        %v378 = vmul.f32 %v369, %v370
        %387 = vrot.lane.b32.xlu0 %v307, 112
        %v388 = vpop.permute.xlu0 %387
        %389 = vrot.lane.b32.xlu0 %v312, 112
        %v390 = vpop.permute.xlu0 %389
        %391 = vrot.lane.b32.xlu0 %v317, 112
        %v392 = vpop.permute.xlu0 %391
        %393 = vrot.lane.b32.xlu0 %v322, 112
        %v394 = vpop.permute.xlu0 %393
        %395 = vrot.lane.b32.xlu0 %v327, 112
        %v396 = vpop.permute.xlu0 %395
        %397 = vrot.lane.b32.xlu0 %v332, 112
        %v398 = vpop.permute.xlu0 %397
        %399 = vrot.lane.b32.xlu0 %v337, 112
        %v400 = vpop.permute.xlu0 %399
        %401 = vrot.lane.b32.xlu0 %v342, 112
        %v402 = vpop.permute.xlu0 %401
        %v411 = vsel %vm345, %v388, 0.0
        %412 = vadd.xlane.f32.xlu0 %v411
        %v413 = vpop.xlane.xlu0 %412
        %v414 = vsel %vm345, %v390, 0.0
        %415 = vadd.xlane.f32.xlu0 %v414
        %v416 = vpop.xlane.xlu0 %415
        %v417 = vsel %vm345, %v392, 0.0
        %418 = vadd.xlane.f32.xlu0 %v417
        %v419 = vpop.xlane.xlu0 %418
        %v420 = vsel %vm345, %v394, 0.0
        %421 = vadd.xlane.f32.xlu0 %v420
        %v422 = vpop.xlane.xlu0 %421
        %v423 = vsel %vm345, %v396, 0.0
        %424 = vadd.xlane.f32.xlu0 %v423
        %v425 = vpop.xlane.xlu0 %424
        %v426 = vsel %vm345, %v398, 0.0
        %427 = vadd.xlane.f32.xlu0 %v426
        %v428 = vpop.xlane.xlu0 %427
        %v429 = vsel %vm345, %v400, 0.0
        %430 = vadd.xlane.f32.xlu0 %v429
        %v431 = vpop.xlane.xlu0 %430
        %v432 = vsel %vm345, %v402, 0.0
        %433 = vadd.xlane.f32.xlu0 %v432
        %v434 = vpop.xlane.xlu0 %433
        %v435 = vmul.f32 %v413, %v370
        %v436 = vmul.f32 %v416, %v370
        %v437 = vmul.f32 %v419, %v370
        %v438 = vmul.f32 %v422, %v370
        %v439 = vmul.f32 %v425, %v370
        %v440 = vmul.f32 %v428, %v370
        %v441 = vmul.f32 %v431, %v370
        %v442 = vmul.f32 %v434, %v370
        %vm443 = vcmp.ge.s32.totalorder %v210, 16
        %v444 = vsel %vm443, %v435, %v371
        %v445 = vsel %vm443, %v436, %v372
        %v446 = vsel %vm443, %v437, %v373
        %v447 = vsel %vm443, %v438, %v374
        %v448 = vsel %vm443, %v439, %v375
        %v449 = vsel %vm443, %v440, %v376
        %v450 = vsel %vm443, %v441, %v377
        %v451 = vsel %vm443, %v442, %v378
        %v452 = vsub.f32 %v307, %v444
        %v453 = vsub.f32 %v312, %v445
        %v454 = vsub.f32 %v317, %v446
        %v455 = vsub.f32 %v322, %v447
        %v456 = vsub.f32 %v327, %v448
        %v457 = vsub.f32 %v332, %v449
        %v458 = vsub.f32 %v337, %v450
        %v459 = vsub.f32 %v342, %v451
        %v460 = vmul.f32 %v452, %v452
        %v461 = vmul.f32 %v453, %v453
        %v462 = vmul.f32 %v454, %v454
        %v463 = vmul.f32 %v455, %v455
        %v464 = vmul.f32 %v456, %v456
        %v465 = vmul.f32 %v457, %v457
        %v466 = vmul.f32 %v458, %v458
        %v467 = vmul.f32 %v459, %v459
        %v468 = vsel %vm345, %v460, 0.0
        %469 = vadd.xlane.f32.xlu0 %v468
        %v470 = vpop.xlane.xlu0 %469
        %v471 = vsel %vm345, %v461, 0.0
        %472 = vadd.xlane.f32.xlu0 %v471
        %v473 = vpop.xlane.xlu0 %472
        %v474 = vsel %vm345, %v462, 0.0
        %475 = vadd.xlane.f32.xlu0 %v474
        %v476 = vpop.xlane.xlu0 %475
        %v477 = vsel %vm345, %v463, 0.0
        %478 = vadd.xlane.f32.xlu0 %v477
        %v479 = vpop.xlane.xlu0 %478
        %v480 = vsel %vm345, %v464, 0.0
        %481 = vadd.xlane.f32.xlu0 %v480
        %v482 = vpop.xlane.xlu0 %481
        %v483 = vsel %vm345, %v465, 0.0
        %484 = vadd.xlane.f32.xlu0 %v483
        %v485 = vpop.xlane.xlu0 %484
        %v486 = vsel %vm345, %v466, 0.0
        %487 = vadd.xlane.f32.xlu0 %v486
        %v488 = vpop.xlane.xlu0 %487
        %v489 = vsel %vm345, %v467, 0.0
        %490 = vadd.xlane.f32.xlu0 %v489
        %v491 = vpop.xlane.xlu0 %490
        %v492 = vmul.f32 %v470, %v370
        %v493 = vmul.f32 %v473, %v370
        %v494 = vmul.f32 %v476, %v370
        %v495 = vmul.f32 %v479, %v370
        %v496 = vmul.f32 %v482, %v370
        %v497 = vmul.f32 %v485, %v370
        %v498 = vmul.f32 %v488, %v370
        %v499 = vmul.f32 %v491, %v370
        %v500 = vadd.f32 %v492, 1e-05
        %v501 = vadd.f32 %v493, 1e-05
        %v502 = vadd.f32 %v494, 1e-05
        %v503 = vadd.f32 %v495, 1e-05
        %v504 = vadd.f32 %v496, 1e-05
        %v505 = vadd.f32 %v497, 1e-05
        %v506 = vadd.f32 %v498, 1e-05
        %v507 = vadd.f32 %v499, 1e-05
        %v508 = vrsqrt.pop %v500
        %v509 = vrsqrt.pop %v501
        %v510 = vrsqrt.pop %v502
        %v511 = vrsqrt.pop %v503
        %v512 = vrsqrt.pop %v504
        %v513 = vrsqrt.pop %v505
        %v514 = vrsqrt.pop %v506
        %v515 = vrsqrt.pop %v507
        %524 = vrot.lane.b32.xlu0 %v460, 112
        %v525 = vpop.permute.xlu0 %524
        %526 = vrot.lane.b32.xlu0 %v461, 112
        %v527 = vpop.permute.xlu0 %526
        %528 = vrot.lane.b32.xlu0 %v462, 112
        %v529 = vpop.permute.xlu0 %528
        %530 = vrot.lane.b32.xlu0 %v463, 112
        %v531 = vpop.permute.xlu0 %530
        %532 = vrot.lane.b32.xlu0 %v464, 112
        %v533 = vpop.permute.xlu0 %532
        %534 = vrot.lane.b32.xlu0 %v465, 112
        %v535 = vpop.permute.xlu0 %534
        %536 = vrot.lane.b32.xlu0 %v466, 112
        %v537 = vpop.permute.xlu0 %536
        %538 = vrot.lane.b32.xlu0 %v467, 112
        %v539 = vpop.permute.xlu0 %538
        %v548 = vsel %vm345, %v525, 0.0
        %549 = vadd.xlane.f32.xlu0 %v548
        %v550 = vpop.xlane.xlu0 %549
        %v551 = vsel %vm345, %v527, 0.0
        %552 = vadd.xlane.f32.xlu0 %v551
        %v553 = vpop.xlane.xlu0 %552
        %v554 = vsel %vm345, %v529, 0.0
        %555 = vadd.xlane.f32.xlu0 %v554
        %v556 = vpop.xlane.xlu0 %555
        %v557 = vsel %vm345, %v531, 0.0
        %558 = vadd.xlane.f32.xlu0 %v557
        %v559 = vpop.xlane.xlu0 %558
        %v560 = vsel %vm345, %v533, 0.0
        %561 = vadd.xlane.f32.xlu0 %v560
        %v562 = vpop.xlane.xlu0 %561
        %v563 = vsel %vm345, %v535, 0.0
        %564 = vadd.xlane.f32.xlu0 %v563
        %v565 = vpop.xlane.xlu0 %564
        %v566 = vsel %vm345, %v537, 0.0
        %567 = vadd.xlane.f32.xlu0 %v566
        %v568 = vpop.xlane.xlu0 %567
        %v569 = vsel %vm345, %v539, 0.0
        %570 = vadd.xlane.f32.xlu0 %v569
        %v571 = vpop.xlane.xlu0 %570
        %v572 = vmul.f32 %v550, %v370
        %v573 = vmul.f32 %v553, %v370
        %v574 = vmul.f32 %v556, %v370
        %v575 = vmul.f32 %v559, %v370
        %v576 = vmul.f32 %v562, %v370
        %v577 = vmul.f32 %v565, %v370
        %v578 = vmul.f32 %v568, %v370
        %v579 = vmul.f32 %v571, %v370
        %v580 = vadd.f32 %v572, 1e-05
        %v581 = vadd.f32 %v573, 1e-05
        %v582 = vadd.f32 %v574, 1e-05
        %v583 = vadd.f32 %v575, 1e-05
        %v584 = vadd.f32 %v576, 1e-05
        %v585 = vadd.f32 %v577, 1e-05
        %v586 = vadd.f32 %v578, 1e-05
        %v587 = vadd.f32 %v579, 1e-05
        %v588 = vrsqrt.pop %v580
        %v589 = vrsqrt.pop %v581
        %v590 = vrsqrt.pop %v582
        %v591 = vrsqrt.pop %v583
        %v592 = vrsqrt.pop %v584
        %v593 = vrsqrt.pop %v585
        %v594 = vrsqrt.pop %v586
        %v595 = vrsqrt.pop %v587
        %v596 = vsel %vm443, %v588, %v508
        %v597 = vsel %vm443, %v589, %v509
        %v598 = vsel %vm443, %v590, %v510
        %v599 = vsel %vm443, %v591, %v511
        %v600 = vsel %vm443, %v592, %v512
        %v601 = vsel %vm443, %v593, %v513
        %v602 = vsel %vm443, %v594, %v514
        %v603 = vsel %vm443, %v595, %v515
        %v604 = vmul.f32 %v452, %v596
        %v605 = vmul.f32 %v453, %v597
        %v606 = vmul.f32 %v454, %v598
        %v607 = vmul.f32 %v455, %v599
        %v608 = vmul.f32 %v456, %v600
        %v609 = vmul.f32 %v457, %v601
        %v610 = vmul.f32 %v458, %v602
        %v611 = vmul.f32 %v459, %v603
        %v613 = vlaneseq
        %v614 = vshrl.u32 %v613, 7
        %v615 = vsub.s32 0, %v614
        %v616 = vrot.slane %v207, %v615
        %v618 = vmul.f32 %v604, %v616
        %v619 = vmul.f32 %v605, %v616
        %v620 = vmul.f32 %v606, %v616
        %v621 = vmul.f32 %v607, %v616
        %v622 = vmul.f32 %v608, %v616
        %v623 = vmul.f32 %v609, %v616
        %v624 = vmul.f32 %v610, %v616
        %v625 = vmul.f32 %v611, %v616
        %v627 = vlaneseq
        %v628 = vshrl.u32 %v627, 7
        %v629 = vsub.s32 0, %v628
        %v630 = vrot.slane %v208, %v629
        %v632 = vadd.f32 %v618, %v630
        %v633 = vadd.f32 %v619, %v630
        %v634 = vadd.f32 %v620, %v630
        %v635 = vadd.f32 %v621, %v630
        %v636 = vadd.f32 %v622, %v630
        %v637 = vadd.f32 %v623, %v630
        %v638 = vadd.f32 %v624, %v630
        %v639 = vadd.f32 %v625, %v630
        %640 = vst.msk [vmem:[%s191] sm:$0xff] %vm215, %v632
        %641 = vst.msk [vmem:[%s191 + $0x10] sm:$0xff] %vm215, %v633
        %642 = vst.msk [vmem:[%s191 + $0x20] sm:$0xff] %vm215, %v634
        %643 = vst.msk [vmem:[%s191 + $0x30] sm:$0xff] %vm215, %v635
        %644 = vst.msk [vmem:[%s191 + $0x40] sm:$0xff] %vm215, %v636
        %645 = vst.msk [vmem:[%s191 + $0x50] sm:$0xff] %vm215, %v637
        %646 = vst.msk [vmem:[%s191 + $0x60] sm:$0xff] %vm215, %v638
        %647 = vst.msk [vmem:[%s191 + $0x70] sm:$0xff] %vm215, %v639
        %648 = vrot.lane.b32.xlu0 %v307, 96
        %v649 = vpop.permute.xlu0 %648
        %650 = vrot.lane.b32.xlu0 %v312, 96
        %v651 = vpop.permute.xlu0 %650
        %652 = vrot.lane.b32.xlu0 %v317, 96
        %v653 = vpop.permute.xlu0 %652
        %654 = vrot.lane.b32.xlu0 %v322, 96
        %v655 = vpop.permute.xlu0 %654
        %656 = vrot.lane.b32.xlu0 %v327, 96
        %v657 = vpop.permute.xlu0 %656
        %658 = vrot.lane.b32.xlu0 %v332, 96
        %v659 = vpop.permute.xlu0 %658
        %660 = vrot.lane.b32.xlu0 %v337, 96
        %v661 = vpop.permute.xlu0 %660
        %662 = vrot.lane.b32.xlu0 %v342, 96
        %v663 = vpop.permute.xlu0 %662
        %v672 = vsel %vm345, %v649, 0.0
        %673 = vadd.xlane.f32.xlu0 %v672
        %v674 = vpop.xlane.xlu0 %673
        %v675 = vsel %vm345, %v651, 0.0
        %676 = vadd.xlane.f32.xlu0 %v675
        %v677 = vpop.xlane.xlu0 %676
        %v678 = vsel %vm345, %v653, 0.0
        %679 = vadd.xlane.f32.xlu0 %v678
        %v680 = vpop.xlane.xlu0 %679
        %v681 = vsel %vm345, %v655, 0.0
        %682 = vadd.xlane.f32.xlu0 %v681
        %v683 = vpop.xlane.xlu0 %682
        %v684 = vsel %vm345, %v657, 0.0
        %685 = vadd.xlane.f32.xlu0 %v684
        %v686 = vpop.xlane.xlu0 %685
        %v687 = vsel %vm345, %v659, 0.0
        %688 = vadd.xlane.f32.xlu0 %v687
        %v689 = vpop.xlane.xlu0 %688
        %v690 = vsel %vm345, %v661, 0.0
        %691 = vadd.xlane.f32.xlu0 %v690
        %v692 = vpop.xlane.xlu0 %691
        %v693 = vsel %vm345, %v663, 0.0
        %694 = vadd.xlane.f32.xlu0 %v693
        %v695 = vpop.xlane.xlu0 %694
        %v696 = vmul.f32 %v674, %v370
        %v697 = vmul.f32 %v677, %v370
        %v698 = vmul.f32 %v680, %v370
        %v699 = vmul.f32 %v683, %v370
        %v700 = vmul.f32 %v686, %v370
        %v701 = vmul.f32 %v689, %v370
        %v702 = vmul.f32 %v692, %v370
        %v703 = vmul.f32 %v695, %v370
        %704 = vrot.lane.b32.xlu0 %v307, 80
        %v705 = vpop.permute.xlu0 %704
        %706 = vrot.lane.b32.xlu0 %v312, 80
        %v707 = vpop.permute.xlu0 %706
        %708 = vrot.lane.b32.xlu0 %v317, 80
        %v709 = vpop.permute.xlu0 %708
        %710 = vrot.lane.b32.xlu0 %v322, 80
        %v711 = vpop.permute.xlu0 %710
        %712 = vrot.lane.b32.xlu0 %v327, 80
        %v713 = vpop.permute.xlu0 %712
        %714 = vrot.lane.b32.xlu0 %v332, 80
        %v715 = vpop.permute.xlu0 %714
        %716 = vrot.lane.b32.xlu0 %v337, 80
        %v717 = vpop.permute.xlu0 %716
        %718 = vrot.lane.b32.xlu0 %v342, 80
        %v719 = vpop.permute.xlu0 %718
        %v728 = vsel %vm345, %v705, 0.0
        %729 = vadd.xlane.f32.xlu0 %v728
        %v730 = vpop.xlane.xlu0 %729
        %v731 = vsel %vm345, %v707, 0.0
        %732 = vadd.xlane.f32.xlu0 %v731
        %v733 = vpop.xlane.xlu0 %732
        %v734 = vsel %vm345, %v709, 0.0
        %735 = vadd.xlane.f32.xlu0 %v734
        %v736 = vpop.xlane.xlu0 %735
        %v737 = vsel %vm345, %v711, 0.0
        %738 = vadd.xlane.f32.xlu0 %v737
        %v739 = vpop.xlane.xlu0 %738
        %v740 = vsel %vm345, %v713, 0.0
        %741 = vadd.xlane.f32.xlu0 %v740
        %v742 = vpop.xlane.xlu0 %741
        %v743 = vsel %vm345, %v715, 0.0
        %744 = vadd.xlane.f32.xlu0 %v743
        %v745 = vpop.xlane.xlu0 %744
        %v746 = vsel %vm345, %v717, 0.0
        %747 = vadd.xlane.f32.xlu0 %v746
        %v748 = vpop.xlane.xlu0 %747
        %v749 = vsel %vm345, %v719, 0.0
        %750 = vadd.xlane.f32.xlu0 %v749
        %v751 = vpop.xlane.xlu0 %750
        %v752 = vmul.f32 %v730, %v370
        %v753 = vmul.f32 %v733, %v370
        %v754 = vmul.f32 %v736, %v370
        %v755 = vmul.f32 %v739, %v370
        %v756 = vmul.f32 %v742, %v370
        %v757 = vmul.f32 %v745, %v370
        %v758 = vmul.f32 %v748, %v370
        %v759 = vmul.f32 %v751, %v370
        %v760 = vsel %vm443, %v752, %v696
        %v761 = vsel %vm443, %v753, %v697
        %v762 = vsel %vm443, %v754, %v698
        %v763 = vsel %vm443, %v755, %v699
        %v764 = vsel %vm443, %v756, %v700
        %v765 = vsel %vm443, %v757, %v701
        %v766 = vsel %vm443, %v758, %v702
        %v767 = vsel %vm443, %v759, %v703
        %776 = vrot.lane.b32.xlu0 %v760, 32
        %v777 = vpop.permute.xlu0 %776
        %778 = vrot.lane.b32.xlu0 %v761, 32
        %v779 = vpop.permute.xlu0 %778
        %780 = vrot.lane.b32.xlu0 %v762, 32
        %v781 = vpop.permute.xlu0 %780
        %782 = vrot.lane.b32.xlu0 %v763, 32
        %v783 = vpop.permute.xlu0 %782
        %784 = vrot.lane.b32.xlu0 %v764, 32
        %v785 = vpop.permute.xlu0 %784
        %786 = vrot.lane.b32.xlu0 %v765, 32
        %v787 = vpop.permute.xlu0 %786
        %788 = vrot.lane.b32.xlu0 %v766, 32
        %v789 = vpop.permute.xlu0 %788
        %790 = vrot.lane.b32.xlu0 %v767, 32
        %v791 = vpop.permute.xlu0 %790
        %v800 = vsub.f32 %v307, %v777
        %v801 = vsub.f32 %v312, %v779
        %v802 = vsub.f32 %v317, %v781
        %v803 = vsub.f32 %v322, %v783
        %v804 = vsub.f32 %v327, %v785
        %v805 = vsub.f32 %v332, %v787
        %v806 = vsub.f32 %v337, %v789
        %v807 = vsub.f32 %v342, %v791
        %v808 = vmul.f32 %v800, %v800
        %v809 = vmul.f32 %v801, %v801
        %v810 = vmul.f32 %v802, %v802
        %v811 = vmul.f32 %v803, %v803
        %v812 = vmul.f32 %v804, %v804
        %v813 = vmul.f32 %v805, %v805
        %v814 = vmul.f32 %v806, %v806
        %v815 = vmul.f32 %v807, %v807
        %824 = vrot.lane.b32.xlu0 %v808, 96
        %v825 = vpop.permute.xlu0 %824
        %826 = vrot.lane.b32.xlu0 %v809, 96
        %v827 = vpop.permute.xlu0 %826
        %828 = vrot.lane.b32.xlu0 %v810, 96
        %v829 = vpop.permute.xlu0 %828
        %830 = vrot.lane.b32.xlu0 %v811, 96
        %v831 = vpop.permute.xlu0 %830
        %832 = vrot.lane.b32.xlu0 %v812, 96
        %v833 = vpop.permute.xlu0 %832
        %834 = vrot.lane.b32.xlu0 %v813, 96
        %v835 = vpop.permute.xlu0 %834
        %836 = vrot.lane.b32.xlu0 %v814, 96
        %v837 = vpop.permute.xlu0 %836
        %838 = vrot.lane.b32.xlu0 %v815, 96
        %v839 = vpop.permute.xlu0 %838
        %v848 = vsel %vm345, %v825, 0.0
        %849 = vadd.xlane.f32.xlu0 %v848
        %v850 = vpop.xlane.xlu0 %849
        %v851 = vsel %vm345, %v827, 0.0
        %852 = vadd.xlane.f32.xlu0 %v851
        %v853 = vpop.xlane.xlu0 %852
        %v854 = vsel %vm345, %v829, 0.0
        %855 = vadd.xlane.f32.xlu0 %v854
        %v856 = vpop.xlane.xlu0 %855
        %v857 = vsel %vm345, %v831, 0.0
        %858 = vadd.xlane.f32.xlu0 %v857
        %v859 = vpop.xlane.xlu0 %858
        %v860 = vsel %vm345, %v833, 0.0
        %861 = vadd.xlane.f32.xlu0 %v860
        %v862 = vpop.xlane.xlu0 %861
        %v863 = vsel %vm345, %v835, 0.0
        %864 = vadd.xlane.f32.xlu0 %v863
        %v865 = vpop.xlane.xlu0 %864
        %v866 = vsel %vm345, %v837, 0.0
        %867 = vadd.xlane.f32.xlu0 %v866
        %v868 = vpop.xlane.xlu0 %867
        %v869 = vsel %vm345, %v839, 0.0
        %870 = vadd.xlane.f32.xlu0 %v869
        %v871 = vpop.xlane.xlu0 %870
        %v872 = vmul.f32 %v850, %v370
        %v873 = vmul.f32 %v853, %v370
        %v874 = vmul.f32 %v856, %v370
        %v875 = vmul.f32 %v859, %v370
        %v876 = vmul.f32 %v862, %v370
        %v877 = vmul.f32 %v865, %v370
        %v878 = vmul.f32 %v868, %v370
        %v879 = vmul.f32 %v871, %v370
        %v880 = vadd.f32 %v872, 1e-05
        %v881 = vadd.f32 %v873, 1e-05
        %v882 = vadd.f32 %v874, 1e-05
        %v883 = vadd.f32 %v875, 1e-05
        %v884 = vadd.f32 %v876, 1e-05
        %v885 = vadd.f32 %v877, 1e-05
        %v886 = vadd.f32 %v878, 1e-05
        %v887 = vadd.f32 %v879, 1e-05
        %v888 = vrsqrt.pop %v880
        %v889 = vrsqrt.pop %v881
        %v890 = vrsqrt.pop %v882
        %v891 = vrsqrt.pop %v883
        %v892 = vrsqrt.pop %v884
        %v893 = vrsqrt.pop %v885
        %v894 = vrsqrt.pop %v886
        %v895 = vrsqrt.pop %v887
        %896 = vrot.lane.b32.xlu0 %v808, 80
        %v897 = vpop.permute.xlu0 %896
        %898 = vrot.lane.b32.xlu0 %v809, 80
        %v899 = vpop.permute.xlu0 %898
        %900 = vrot.lane.b32.xlu0 %v810, 80
        %v901 = vpop.permute.xlu0 %900
        %902 = vrot.lane.b32.xlu0 %v811, 80
        %v903 = vpop.permute.xlu0 %902
        %904 = vrot.lane.b32.xlu0 %v812, 80
        %v905 = vpop.permute.xlu0 %904
        %906 = vrot.lane.b32.xlu0 %v813, 80
        %v907 = vpop.permute.xlu0 %906
        %908 = vrot.lane.b32.xlu0 %v814, 80
        %v909 = vpop.permute.xlu0 %908
        %910 = vrot.lane.b32.xlu0 %v815, 80
        %v911 = vpop.permute.xlu0 %910
        %v920 = vsel %vm345, %v897, 0.0
        %921 = vadd.xlane.f32.xlu0 %v920
        %v922 = vpop.xlane.xlu0 %921
        %v923 = vsel %vm345, %v899, 0.0
        %924 = vadd.xlane.f32.xlu0 %v923
        %v925 = vpop.xlane.xlu0 %924
        %v926 = vsel %vm345, %v901, 0.0
        %927 = vadd.xlane.f32.xlu0 %v926
        %v928 = vpop.xlane.xlu0 %927
        %v929 = vsel %vm345, %v903, 0.0
        %930 = vadd.xlane.f32.xlu0 %v929
        %v931 = vpop.xlane.xlu0 %930
        %v932 = vsel %vm345, %v905, 0.0
        %933 = vadd.xlane.f32.xlu0 %v932
        %v934 = vpop.xlane.xlu0 %933
        %v935 = vsel %vm345, %v907, 0.0
        %936 = vadd.xlane.f32.xlu0 %v935
        %v937 = vpop.xlane.xlu0 %936
        %v938 = vsel %vm345, %v909, 0.0
        %939 = vadd.xlane.f32.xlu0 %v938
        %v940 = vpop.xlane.xlu0 %939
        %v941 = vsel %vm345, %v911, 0.0
        %942 = vadd.xlane.f32.xlu0 %v941
        %v943 = vpop.xlane.xlu0 %942
        %v944 = vmul.f32 %v922, %v370
        %v945 = vmul.f32 %v925, %v370
        %v946 = vmul.f32 %v928, %v370
        %v947 = vmul.f32 %v931, %v370
        %v948 = vmul.f32 %v934, %v370
        %v949 = vmul.f32 %v937, %v370
        %v950 = vmul.f32 %v940, %v370
        %v951 = vmul.f32 %v943, %v370
        %v952 = vadd.f32 %v944, 1e-05
        %v953 = vadd.f32 %v945, 1e-05
        %v954 = vadd.f32 %v946, 1e-05
        %v955 = vadd.f32 %v947, 1e-05
        %v956 = vadd.f32 %v948, 1e-05
        %v957 = vadd.f32 %v949, 1e-05
        %v958 = vadd.f32 %v950, 1e-05
        %v959 = vadd.f32 %v951, 1e-05
        %v960 = vrsqrt.pop %v952
        %v961 = vrsqrt.pop %v953
        %v962 = vrsqrt.pop %v954
        %v963 = vrsqrt.pop %v955
        %v964 = vrsqrt.pop %v956
        %v965 = vrsqrt.pop %v957
        %v966 = vrsqrt.pop %v958
        %v967 = vrsqrt.pop %v959
        %v968 = vsel %vm443, %v960, %v888
        %v969 = vsel %vm443, %v961, %v889
        %v970 = vsel %vm443, %v962, %v890
        %v971 = vsel %vm443, %v963, %v891
        %v972 = vsel %vm443, %v964, %v892
        %v973 = vsel %vm443, %v965, %v893
        %v974 = vsel %vm443, %v966, %v894
        %v975 = vsel %vm443, %v967, %v895
        %984 = vrot.lane.b32.xlu0 %v968, 32
        %v985 = vpop.permute.xlu0 %984
        %986 = vrot.lane.b32.xlu0 %v969, 32
        %v987 = vpop.permute.xlu0 %986
        %988 = vrot.lane.b32.xlu0 %v970, 32
        %v989 = vpop.permute.xlu0 %988
        %990 = vrot.lane.b32.xlu0 %v971, 32
        %v991 = vpop.permute.xlu0 %990
        %992 = vrot.lane.b32.xlu0 %v972, 32
        %v993 = vpop.permute.xlu0 %992
        %994 = vrot.lane.b32.xlu0 %v973, 32
        %v995 = vpop.permute.xlu0 %994
        %996 = vrot.lane.b32.xlu0 %v974, 32
        %v997 = vpop.permute.xlu0 %996
        %998 = vrot.lane.b32.xlu0 %v975, 32
        %v999 = vpop.permute.xlu0 %998
        %v1008 = vmul.f32 %v800, %v985
        %v1009 = vmul.f32 %v801, %v987
        %v1010 = vmul.f32 %v802, %v989
        %v1011 = vmul.f32 %v803, %v991
        %v1012 = vmul.f32 %v804, %v993
        %v1013 = vmul.f32 %v805, %v995
        %v1014 = vmul.f32 %v806, %v997
        %v1015 = vmul.f32 %v807, %v999
        %1016 = vrot.lane.b32.xlu0 %v616, 32
        %v1017 = vpop.permute.xlu0 %1016
        %v1019 = vmul.f32 %v1008, %v1017
        %v1020 = vmul.f32 %v1009, %v1017
        %v1021 = vmul.f32 %v1010, %v1017
        %v1022 = vmul.f32 %v1011, %v1017
        %v1023 = vmul.f32 %v1012, %v1017
        %v1024 = vmul.f32 %v1013, %v1017
        %v1025 = vmul.f32 %v1014, %v1017
        %v1026 = vmul.f32 %v1015, %v1017
        %1027 = vrot.lane.b32.xlu0 %v630, 32
        %v1028 = vpop.permute.xlu0 %1027
        %v1030 = vadd.f32 %v1019, %v1028
        %v1031 = vadd.f32 %v1020, %v1028
        %v1032 = vadd.f32 %v1021, %v1028
        %v1033 = vadd.f32 %v1022, %v1028
        %v1034 = vadd.f32 %v1023, %v1028
        %v1035 = vadd.f32 %v1024, %v1028
        %v1036 = vadd.f32 %v1025, %v1028
        %v1037 = vadd.f32 %v1026, %v1028
        %1046 = vrot.lane.b32.xlu0 %v1030, 96
        %v1047 = vpop.permute.xlu0 %1046
        %1048 = vrot.lane.b32.xlu0 %v1031, 96
        %v1049 = vpop.permute.xlu0 %1048
        %1050 = vrot.lane.b32.xlu0 %v1032, 96
        %v1051 = vpop.permute.xlu0 %1050
        %1052 = vrot.lane.b32.xlu0 %v1033, 96
        %v1053 = vpop.permute.xlu0 %1052
        %1054 = vrot.lane.b32.xlu0 %v1034, 96
        %v1055 = vpop.permute.xlu0 %1054
        %1056 = vrot.lane.b32.xlu0 %v1035, 96
        %v1057 = vpop.permute.xlu0 %1056
        %1058 = vrot.lane.b32.xlu0 %v1036, 96
        %v1059 = vpop.permute.xlu0 %1058
        %1060 = vrot.lane.b32.xlu0 %v1037, 96
        %v1061 = vpop.permute.xlu0 %1060
        %s1070 = scalar_lea.vmem %s191, 8 [#allocation2]
        %1071 = vst.msk [vmem:[%s1070] sm:$0xff] %vm215, %v1047
        %1072 = vst.msk [vmem:[%s1070 + $0x10] sm:$0xff] %vm215, %v1049
        %1073 = vst.msk [vmem:[%s1070 + $0x20] sm:$0xff] %vm215, %v1051
        %1074 = vst.msk [vmem:[%s1070 + $0x30] sm:$0xff] %vm215, %v1053
        %1075 = vst.msk [vmem:[%s1070 + $0x40] sm:$0xff] %vm215, %v1055
        %1076 = vst.msk [vmem:[%s1070 + $0x50] sm:$0xff] %vm215, %v1057
        %1077 = vst.msk [vmem:[%s1070 + $0x60] sm:$0xff] %vm215, %v1059
        %1078 = vst.msk [vmem:[%s1070 + $0x70] sm:$0xff] %vm215, %v1061
        %s1079 = sand.u32 %s115, 1
        %s1080 = scalar_lea.sflag [#allocation3], %s1079
        %s1081 = sand.u32 %s115, 1
        %s1082 = smul.addr %s1081, 128
        %s1083 = scalar_lea.vmem [#allocation2], %s1082
        // Predicated region
        $region37: #{tpu_custom_call.1} parent=35 // pred_check
          %p1084 = pneg %p125
        $region38: #{tpu_custom_call.1} parent=35 // pred_check_branch
          %1086 = sbr.rel (%p1084) target = $region40
        $region39: #{tpu_custom_call.1} parent=35 // pred_region
          %s1087 = smul.u32 8, %s18
          %s1089 = ssub.s32 2048, 2048
          %1090 = vsyncadd %s1080, %s1089
          %s1091 = smul.addr %s1087, 2
          %s1092 = smul.addr %s1091, 128
          %s1093 = scalar_lea.hbm %s4, %s1092
          %s1094 = sshll.u32 %s1083, 4
          %s1095 = int_to_ptr.vmem [resolvable:$true] %s1094
          %1100 = dma.vmem_to_hbm [thread:$0]  %s1095, 2048, %s1093, %s1080, 128, 128, 8
        $region40: #{tpu_custom_call.1} parent=35 // pred_fallthru
          _
      $region36: #{tpu_custom_call.1} parent=5 // pred_fallthru
        _
      %p1101 = scmp.le.s32.totalorder 2, %s13
      // Predicated region
      $region41: #{tpu_custom_call.1} parent=5 // pred_check
        %p1102 = pneg %p1101
      $region42: #{tpu_custom_call.1} parent=5 // pred_check_branch
        %1104 = sbr.rel (%p1102) target = $region44
      $region43: #{tpu_custom_call.1} parent=5 // pred_region
        %s1105 = ssub.s32 %s13, 2
        // Predicated region
        $region45: #{tpu_custom_call.1} parent=43 // pred_check
          %p1106 = pneg %p131
        $region46: #{tpu_custom_call.1} parent=43 // pred_check_branch
          %1108 = sbr.rel (%p1106) target = $region48
        $region47: #{tpu_custom_call.1} parent=43 // pred_region
          %s1109 = sand.u32 %s116, 1
          %s1110 = scalar_lea.sflag [#allocation3], %s1109
          %s1111 = sand.u32 %s116, 1
          %s1112 = smul.addr %s1111, 128
          %s1113 = scalar_lea.vmem [#allocation2], %s1112
          %1114 = dma.done %s1110, 2048
        $region48: #{tpu_custom_call.1} parent=43 // pred_fallthru
          _
      $region44: #{tpu_custom_call.1} parent=5 // pred_fallthru
        _
    $region6: #{tpu_custom_call.1} parent=1 // loop_footer
      %s17 = sadd.s32 1, %s13
    $region7: #{tpu_custom_call.1} parent=1 // loop_footer_branch
      %12 = sbr.rel target = $region3
    $region8: #{tpu_custom_call.1} parent=1 // loop_exit
      _
    %1115 = vsyncpa [#allocation3], 1
    %s1116 = scalar_lea.sflag [#allocation3], 1
    %1117 = vsyncpa %s1116, 1

</llo_original>
